<compile_context>
chip_gen: v7x
topology: tpu7x:2x2x1
jax: 0.10.0
libtpu: 0.0.40
codegen_flags: <defaults>
</compile_context>

<pallas_src>
import jax
import jax.numpy as jnp
from jax import lax
from jax.experimental import pallas as pl
from jax.experimental.pallas import tpu as pltpu

VOCAB = 1000  # max_position_embeddings


def _round_up(x, m):
    return (x + m - 1) // m * m


def _max_tile_rows():
    # 512-row tiles on 128 MiB-VMEM parts (v5e/v6e); 256 on 64 MiB parts (v7x).
    try:
        vmem = pltpu.get_tpu_info().vmem_capacity_bytes
    except Exception:
        vmem = 0
    return 512 if vmem >= 100 * 1024 * 1024 else 256


def spatial_emb_kernel(idx_ref, tab_ref, out_ref):
    # idx_ref: (T, 4) int32, pre-clamped to [0, VOCAB-1]
    # tab_ref: (4, V_pad, H_pad) stacked [x; y; h; w] tables (zero padded)
    # out_ref: (T, H_pad)
    kdim = tab_ref.shape[1]
    # (1, V_pad) iota: stays at vreg granularity and fuses into the compares.
    vocab_iota = lax.broadcasted_iota(jnp.int32, (1, kdim), 1)
    acc = None
    for c in range(4):  # unrolled; one K=1024 dot per coordinate
        onehot = (idx_ref[:, c:c + 1] == vocab_iota).astype(tab_ref.dtype)
        part = jnp.dot(onehot, tab_ref[c],
                       preferred_element_type=jnp.float32)
        acc = part if acc is None else acc + part
    out_ref[...] = acc.astype(out_ref.dtype)


def spatial_embeddings(bbox, x_tab, y_tab, h_tab, w_tab, *, compute_dtype=None):
    B, S, C = bbox.shape
    assert C == 4
    V, H = x_tab.shape
    out_dtype = x_tab.dtype

    V_pad = _round_up(V, 128)   # 1000 -> 1024: clean (8,128) K tiles
    H_pad = _round_up(H, 128)   # lane-dense output stores

    # (4, V_pad, H_pad); clamped indices never reach the zero-padded rows.
    tab = jnp.stack([x_tab, y_tab, h_tab, w_tab], axis=0)
    tab = jnp.pad(tab, ((0, 0), (0, V_pad - V), (0, H_pad - H)))
    if compute_dtype is not None:
        # Only use when the surrounding model runs bf16: bf16 tables will not
        # match the f32 gather reference to 1e-5.
        tab = tab.astype(compute_dtype)

    # Flatten (B, S) -> rows; clamp once, in plain XLA (tiny int32 work).
    R = B * S
    idx = jnp.clip(bbox.reshape(R, 4), 0, V - 1).astype(jnp.int32)

    max_tile = _max_tile_rows()
    if R <= 2 * max_tile:
        # Aim for >=2 grid steps so both v7x TensorCores get a tile.
        tile_rows = min(max_tile, _round_up(pl.cdiv(R, 2), 8))
    else:
        tile_rows = max_tile

    R_pad = _round_up(R, tile_rows)
    if R_pad != R:
        # Padded rows (all-zero indices) produce a harmless sum of the four
        # row-0 embeddings and are sliced away below.
        idx = jnp.pad(idx, ((0, R_pad - R), (0, 0)))

    grid = (R_pad // tile_rows,)
    out = pl.pallas_call(
        spatial_emb_kernel,
        out_shape=jax.ShapeDtypeStruct((R_pad, H_pad), out_dtype),
        grid=grid,
        in_specs=[
            pl.BlockSpec((tile_rows, 4), lambda i: (i, 0)),
            # Constant table block (same block index every step -> fetched once).
            pl.BlockSpec((4, V_pad, H_pad), lambda i: (0, 0, 0)),
        ],
        out_specs=pl.BlockSpec((tile_rows, H_pad), lambda i: (i, 0)),
        compiler_params=pltpu.CompilerParams(
            dimension_semantics=("parallel",),
            vmem_limit_bytes=64 * 1024 * 1024),
    )(idx, tab)

    # When H << H_pad a consumer that tolerates the padded layout can skip this
    # slice; kept here so the returned shape matches the module contract.
    return out[:R, :H].reshape(B, S, H)


def reference(bbox, x_tab, y_tab, h_tab, w_tab):
    idx = jnp.clip(bbox, 0, VOCAB - 1).astype(jnp.int32)
    return (jnp.take(x_tab, idx[:, :, 0], axis=0)
            + jnp.take(y_tab, idx[:, :, 1], axis=0)
            + jnp.take(h_tab, idx[:, :, 2], axis=0)
            + jnp.take(w_tab, idx[:, :, 3], axis=0))


if __name__ == "__main__":
    B, S, H = 2, 8, 32

    key = jax.random.PRNGKey(0)
    k_x, k_y, k_h, k_w, k_bbox = jax.random.split(key, 5)

    # Deterministic parameter init (nn.Embedding default ~ N(0,1); scaled).
    x_tab = (0.02 * jax.random.normal(k_x, (VOCAB, H))).astype(jnp.float32)
    y_tab = (0.02 * jax.random.normal(k_y, (VOCAB, H))).astype(jnp.float32)
    h_tab = (0.02 * jax.random.normal(k_h, (VOCAB, H))).astype(jnp.float32)
    w_tab = (0.02 * jax.random.normal(k_w, (VOCAB, H))).astype(jnp.float32)

    # bbox with out-of-range values to exercise the clamp.
    bbox = jax.random.randint(k_bbox, (B, S, 4), minval=-50, maxval=1100,
                              dtype=jnp.int32)

    out = spatial_embeddings(bbox, x_tab, y_tab, h_tab, w_tab)
    out = jax.block_until_ready(out)

    ref = reference(bbox, x_tab, y_tab, h_tab, w_tab)
    assert out.shape == (B, S, H)
    assert jnp.allclose(out, ref, atol=1e-5, rtol=1e-5)

    print("KERNEL_OK")
</pallas_src>

<mosaic_0001>
module attributes {stable_mosaic.version = 11 : i64} {
  func.func @spatial_emb_kernel(%arg0: i32, %arg1: memref<8x4xi32, #tpu.memory_space<vmem>>, %arg2: memref<4x1024x128xf32, #tpu.memory_space<vmem>>, %arg3: memref<8x128xf32, #tpu.memory_space<vmem>>) attributes {dimension_semantics = [#tpu.dimension_semantics<parallel>], iteration_bounds = array<i64: 2>, scalar_prefetch = 0 : i64, scratch_operands = 0 : i64, tpu.core_type = #tpu.core_type<tc>, window_params = [{transform_indices = @transform_0, window_bounds = array<i64: 8, 4>}, {pipeline_mode = #tpu.pipeline_mode<synchronous>, transform_indices = @transform_1, window_bounds = array<i64: 4, 1024, 128>}, {transform_indices = @transform_2, window_bounds = array<i64: 8, 128>}]} {
    %0 = tpu.iota {dimensions = array<i32: 1>} : vector<1x1024xi32>
    %c0 = arith.constant 0 : index
    %c0_0 = arith.constant 0 : index
    %1 = vector.load %arg1[%c0, %c0_0] : memref<8x4xi32, #tpu.memory_space<vmem>>, vector<8x1xi32>
    %2 = vector.broadcast %1 : vector<8x1xi32> to vector<8x1024xi32>
    %3 = vector.broadcast %0 : vector<1x1024xi32> to vector<8x1024xi32>
    %4 = arith.cmpi eq, %2, %3 : vector<8x1024xi32>
    %5 = arith.extui %4 : vector<8x1024xi1> to vector<8x1024xi32>
    %6 = arith.sitofp %5 : vector<8x1024xi32> to vector<8x1024xf32>
    %c0_1 = arith.constant 0 : index
    %c0_2 = arith.constant 0 : index
    %c0_3 = arith.constant 0 : index
    %7 = vector.load %arg2[%c0_1, %c0_2, %c0_3] : memref<4x1024x128xf32, #tpu.memory_space<vmem>>, vector<1x1024x128xf32>
    %8 = vector.shape_cast %7 : vector<1x1024x128xf32> to vector<1024x128xf32>
    %cst = arith.constant dense<0.000000e+00> : vector<8x128xf32>
    %9 = tpu.matmul %6, %8, %cst {dimension_numbers = #tpu.dot_dimension_numbers<[1], [0], [0], [1], [0, 0, 1, 1], [], []>} : vector<8x1024xf32>, vector<1024x128xf32>, vector<8x128xf32> -> vector<8x128xf32>
    %c0_4 = arith.constant 0 : index
    %c1 = arith.constant 1 : index
    %10 = vector.load %arg1[%c0_4, %c1] : memref<8x4xi32, #tpu.memory_space<vmem>>, vector<8x1xi32>
    %11 = vector.broadcast %10 : vector<8x1xi32> to vector<8x1024xi32>
    %12 = vector.broadcast %0 : vector<1x1024xi32> to vector<8x1024xi32>
    %13 = arith.cmpi eq, %11, %12 : vector<8x1024xi32>
    %14 = arith.extui %13 : vector<8x1024xi1> to vector<8x1024xi32>
    %15 = arith.sitofp %14 : vector<8x1024xi32> to vector<8x1024xf32>
    %c1_5 = arith.constant 1 : index
    %c0_6 = arith.constant 0 : index
    %c0_7 = arith.constant 0 : index
    %16 = vector.load %arg2[%c1_5, %c0_6, %c0_7] : memref<4x1024x128xf32, #tpu.memory_space<vmem>>, vector<1x1024x128xf32>
    %17 = vector.shape_cast %16 : vector<1x1024x128xf32> to vector<1024x128xf32>
    %cst_8 = arith.constant dense<0.000000e+00> : vector<8x128xf32>
    %18 = tpu.matmul %15, %17, %cst_8 {dimension_numbers = #tpu.dot_dimension_numbers<[1], [0], [0], [1], [0, 0, 1, 1], [], []>} : vector<8x1024xf32>, vector<1024x128xf32>, vector<8x128xf32> -> vector<8x128xf32>
    %19 = arith.addf %9, %18 : vector<8x128xf32>
    %c0_9 = arith.constant 0 : index
    %c2 = arith.constant 2 : index
    %20 = vector.load %arg1[%c0_9, %c2] : memref<8x4xi32, #tpu.memory_space<vmem>>, vector<8x1xi32>
    %21 = vector.broadcast %20 : vector<8x1xi32> to vector<8x1024xi32>
    %22 = vector.broadcast %0 : vector<1x1024xi32> to vector<8x1024xi32>
    %23 = arith.cmpi eq, %21, %22 : vector<8x1024xi32>
    %24 = arith.extui %23 : vector<8x1024xi1> to vector<8x1024xi32>
    %25 = arith.sitofp %24 : vector<8x1024xi32> to vector<8x1024xf32>
    %c2_10 = arith.constant 2 : index
    %c0_11 = arith.constant 0 : index
    %c0_12 = arith.constant 0 : index
    %26 = vector.load %arg2[%c2_10, %c0_11, %c0_12] : memref<4x1024x128xf32, #tpu.memory_space<vmem>>, vector<1x1024x128xf32>
    %27 = vector.shape_cast %26 : vector<1x1024x128xf32> to vector<1024x128xf32>
    %cst_13 = arith.constant dense<0.000000e+00> : vector<8x128xf32>
    %28 = tpu.matmul %25, %27, %cst_13 {dimension_numbers = #tpu.dot_dimension_numbers<[1], [0], [0], [1], [0, 0, 1, 1], [], []>} : vector<8x1024xf32>, vector<1024x128xf32>, vector<8x128xf32> -> vector<8x128xf32>
    %29 = arith.addf %19, %28 : vector<8x128xf32>
    %c0_14 = arith.constant 0 : index
    %c3 = arith.constant 3 : index
    %30 = vector.load %arg1[%c0_14, %c3] : memref<8x4xi32, #tpu.memory_space<vmem>>, vector<8x1xi32>
    %31 = vector.broadcast %30 : vector<8x1xi32> to vector<8x1024xi32>
    %32 = vector.broadcast %0 : vector<1x1024xi32> to vector<8x1024xi32>
    %33 = arith.cmpi eq, %31, %32 : vector<8x1024xi32>
    %34 = arith.extui %33 : vector<8x1024xi1> to vector<8x1024xi32>
    %35 = arith.sitofp %34 : vector<8x1024xi32> to vector<8x1024xf32>
    %c3_15 = arith.constant 3 : index
    %c0_16 = arith.constant 0 : index
    %c0_17 = arith.constant 0 : index
    %36 = vector.load %arg2[%c3_15, %c0_16, %c0_17] : memref<4x1024x128xf32, #tpu.memory_space<vmem>>, vector<1x1024x128xf32>
    %37 = vector.shape_cast %36 : vector<1x1024x128xf32> to vector<1024x128xf32>
    %cst_18 = arith.constant dense<0.000000e+00> : vector<8x128xf32>
    %38 = tpu.matmul %35, %37, %cst_18 {dimension_numbers = #tpu.dot_dimension_numbers<[1], [0], [0], [1], [0, 0, 1, 1], [], []>} : vector<8x1024xf32>, vector<1024x128xf32>, vector<8x128xf32> -> vector<8x128xf32>
    %39 = arith.addf %29, %38 : vector<8x128xf32>
    %c0_19 = arith.constant 0 : index
    %c0_20 = arith.constant 0 : index
    %40 = vector.load %arg3[%c0_19, %c0_20] : memref<8x128xf32, #tpu.memory_space<vmem>>, vector<8x128xf32>
    tpu.vector_store %arg3[%c0_19, %c0_20], %39 {strides = array<i32>} : memref<8x128xf32, #tpu.memory_space<vmem>>, vector<8x128xf32>,
    return
  }
  func.func @transform_0(%arg0: i32) -> (i32, i32) {
    %c0_i32 = arith.constant 0 : i32
    %c0_i32_0 = arith.constant 0 : i32
    return %arg0, %c0_i32 : i32, i32
  }
  func.func @transform_1(%arg0: i32) -> (i32, i32, i32) {
    %c0_i32 = arith.constant 0 : i32
    %c0_i32_0 = arith.constant 0 : i32
    %c0_i32_1 = arith.constant 0 : i32
    %c0_i32_2 = arith.constant 0 : i32
    return %c0_i32, %c0_i32_0, %c0_i32_1 : i32, i32, i32
  }
  func.func @transform_2(%arg0: i32) -> (i32, i32) {
    %c0_i32 = arith.constant 0 : i32
    %c0_i32_0 = arith.constant 0 : i32
    return %arg0, %c0_i32 : i32, i32
  }
}

</mosaic_0001>

<llo_original>
// kernel: tpu_custom_call.1
$region0: #{tpu_custom_call.1}
  #allocation0 [shape = 'u32[]', space=smem, size = 0x4, offset = 0x4, fixed_abs, tag = 'smem constant byte address 0x4 - core index']
  #allocation1 [shape = 'u32[144,128]{1,0:T(1,128)}', space=vmem, size = 0x12000, scoped, tag = 'internal scratch']
  %s0 = inlined_call_operand.hbm [shape: s32[16,4], index: 0, kind: input, shape index: {}]
  %s1 = inlined_call_operand.hbm [shape: f32[4,1024,128], index: 1, kind: input, shape index: {}]
  %s2 = inlined_call_operand.hbm [shape: f32[16,128], index: 2, kind: output, shape index: {}]
  %s3 = sld [smem:[#allocation0]]
  $region49: #{tpu_custom_call.1} parent=0
    _
  %s5 = ssub.s32 1, %s3
  %s6 = scalar_select 0, %s5, %s3
  $region1: #{tpu_custom_call.1} parent=0
    #allocation2 [shape = 'u8[8192]{0}', space=vmem, size = 0x2000, scoped, tag = 'input window, operand 0']
    #allocation3 [shape = 's32[2]{0}', space=sflag, size = 0x8, scoped, tag = 'scoped memory for tpu_custom_call.1']
    #allocation4 [shape = 's32[2]{0}', space=sflag, size = 0x8, scoped, tag = 'scoped memory for tpu_custom_call.1']
    #allocation5 [shape = 'u8[2097152]{0}', space=vmem, size = 0x200000, scoped, tag = 'input window, operand 1, single buffered']
    #allocation6 [shape = 's32[1]{0}', space=sflag, size = 0x4, scoped, tag = 'scoped memory for tpu_custom_call.1']
    #allocation7 [shape = 'u8[8192]{0}', space=vmem, size = 0x2000, scoped, tag = 'output window, operand 0']
    %7 = vsyncpa [#allocation3], 0
    %s8 = scalar_lea.sflag [#allocation3], 1
    %9 = vsyncpa %s8, 0
    %10 = vsyncpa [#allocation6], 0
    %11 = vsyncpa [#allocation4], 0
    %s12 = scalar_lea.sflag [#allocation4], 1
    %13 = vsyncpa %s12, 0
    loop: start=0, step=1, limit=4
    $region2: #{tpu_custom_call.1} parent=1 // loop_pre_header
      _
    $region3: #{tpu_custom_call.1} parent=1 // loop_header
      %s15 = sphi 0, %s19
      %p16 = scmp.ge.s32.totalorder %s15, 4
      %s25 = sphi 0, %s27
      %s28 = sphi 0, %s25
      %s29 = sphi 0, %s28
      %s45 = sphi 0, %s29
      %s49 = sphi 0, %s49
      %s51 = sphi 0, %s49
      %s52 = sphi 0, %s51
      %s66 = sphi 0, %s52
      %s72 = sphi 0, %s74
      %s75 = sphi 0, %s72
      %s76 = sphi 0, %s75
      %s92 = sphi 0, %s76
    $region4: #{tpu_custom_call.1} parent=1 // loop_header_branch
      %18 = sbr.rel (%p16) target = $region8
    $region5: #{tpu_custom_call.1} parent=1 // loop_body
      %s20 = ssub.s32 %s15, 1
      %s21 = ssub.s32 %s15, 2
      %s22 = sadd.s32 %s15, 1
      %s23 = ssub.s32 %s15, %s22
      %p24 = scmp.eq.s32.totalorder %s23, 0
      %s26 = sadd.s32 %s25, 1
      %s27 = scalar_select %p24, %s25, %s26
      %p30 = pneg %p24
      %p31 = scmp.eq.s32.totalorder %s15, 1
      %p32 = por %p30, %p31
      %p33 = scmp.ne.s32.totalorder %s25, %s28
      %p34 = scmp.eq.s32.totalorder %s15, 0
      %p35 = por %p33, %p34
      %p36 = scmp.ne.s32.totalorder %s25, %s28
      %p37 = scmp.eq.s32.totalorder %s20, 1
      %p38 = por %p36, %p37
      %p39 = scmp.ne.s32.totalorder %s28, %s29
      %p40 = scmp.eq.s32.totalorder %s20, 0
      %p41 = por %p39, %p40
      %p42 = scmp.ne.s32.totalorder %s28, %s29
      %p43 = scmp.eq.s32.totalorder %s21, 1
      %p44 = por %p42, %p43
      %p46 = scmp.ne.s32.totalorder %s29, %s45
      %p47 = scmp.eq.s32.totalorder %s21, 0
      %p48 = por %p46, %p47
      %s50 = sadd.s32 %s49, 1
      %p53 = scmp.eq.s32.totalorder %s15, 1
      %p54 = scmp.ne.s32.totalorder %s49, %s51
      %p55 = scmp.eq.s32.totalorder %s15, 0
      %p56 = por %p54, %p55
      %p57 = scmp.ne.s32.totalorder %s49, %s51
      %p58 = scmp.eq.s32.totalorder %s20, 1
      %p59 = por %p57, %p58
      %p60 = scmp.ne.s32.totalorder %s51, %s52
      %p61 = scmp.eq.s32.totalorder %s20, 0
      %p62 = por %p60, %p61
      %p63 = scmp.ne.s32.totalorder %s51, %s52
      %p64 = scmp.eq.s32.totalorder %s21, 1
      %p65 = por %p63, %p64
      %p67 = scmp.ne.s32.totalorder %s52, %s66
      %p68 = scmp.eq.s32.totalorder %s21, 0
      %p69 = por %p67, %p68
      %s70 = ssub.s32 %s15, %s22
      %p71 = scmp.eq.s32.totalorder %s70, 0
      %s73 = sadd.s32 %s72, 1
      %s74 = scalar_select %p71, %s72, %s73
      %p77 = pneg %p71
      %p78 = scmp.eq.s32.totalorder %s15, 1
      %p79 = por %p77, %p78
      %p80 = scmp.ne.s32.totalorder %s72, %s75
      %p81 = scmp.eq.s32.totalorder %s15, 0
      %p82 = por %p80, %p81
      %p83 = scmp.ne.s32.totalorder %s72, %s75
      %p84 = scmp.eq.s32.totalorder %s20, 1
      %p85 = por %p83, %p84
      %p86 = scmp.ne.s32.totalorder %s75, %s76
      %p87 = scmp.eq.s32.totalorder %s20, 0
      %p88 = por %p86, %p87
      %p89 = scmp.ne.s32.totalorder %s75, %s76
      %p90 = scmp.eq.s32.totalorder %s21, 1
      %p91 = por %p89, %p90
      %p93 = scmp.ne.s32.totalorder %s76, %s92
      %p94 = scmp.eq.s32.totalorder %s21, 0
      %p95 = por %p93, %p94
      %p96 = scmp.le.s32.totalorder 1, %s15
      %p97 = scmp.lt.s32.totalorder %s15, 3
      %p98 = pnand %p96, %p97
      %p99 = pneg %p98
      // Predicated region
      $region9: #{tpu_custom_call.1} parent=5 // pred_check
        _
      $region10: #{tpu_custom_call.1} parent=5 // pred_check_branch
        %101 = sbr.rel (%p98) target = $region12
      $region11: #{tpu_custom_call.1} parent=5 // pred_region
        %s102 = ssub.s32 %s15, 1
        // Predicated region
        $region13: #{tpu_custom_call.1} parent=11 // pred_check
          %p103 = pneg %p62
        $region14: #{tpu_custom_call.1} parent=11 // pred_check_branch
          %105 = sbr.rel (%p103) target = $region16
        $region15: #{tpu_custom_call.1} parent=11 // pred_region
          %s107 = ssub.s32 65536, 65536
          %108 = vsyncadd [#allocation6], %s107
          %s109 = sshll.u32 [#allocation5], 4
          %s110 = int_to_ptr.vmem [resolvable:$true] %s109
          %115 = dma.hbm_to_vmem [thread:$0]  %s1, 65536, %s110, [#allocation6], 128, 128, 8
        $region16: #{tpu_custom_call.1} parent=11 // pred_fallthru
          _
      $region12: #{tpu_custom_call.1} parent=5 // pred_fallthru
        _
      %p116 = scmp.lt.s32.totalorder %s15, 2
      // Predicated region
      $region17: #{tpu_custom_call.1} parent=5 // pred_check
        %p117 = pneg %p116
      $region18: #{tpu_custom_call.1} parent=5 // pred_check_branch
        %119 = sbr.rel (%p117) target = $region20
      $region19: #{tpu_custom_call.1} parent=5 // pred_region
        // Predicated region
        $region21: #{tpu_custom_call.1} parent=19 // pred_check
          %p120 = pneg %p35
        $region22: #{tpu_custom_call.1} parent=19 // pred_check_branch
          %122 = sbr.rel (%p120) target = $region24
        $region23: #{tpu_custom_call.1} parent=19 // pred_region
          %s123 = sand.u32 %s25, 1
          %s124 = scalar_lea.sflag [#allocation3], %s123
          %s125 = sand.u32 %s25, 1
          %s126 = smul.addr %s125, 8
          %s127 = scalar_lea.vmem [#allocation2], %s126
          %s129 = ssub.s32 128, 128
          %130 = vsyncadd %s124, %s129
          %s131 = smul.addr %s15, 128
          %s132 = scalar_lea.hbm %s0, %s131
          %s134 = sshll.u32 %s127, 4
          %s135 = int_to_ptr.vmem [resolvable:$true] %s134
          %137 = dma.hbm_to_vmem [thread:$0]  %s132, 128, %s135, %s124
        $region24: #{tpu_custom_call.1} parent=19 // pred_fallthru
          _
      $region20: #{tpu_custom_call.1} parent=5 // pred_fallthru
        _
      %p138 = scmp.le.s32.totalorder 1, %s15
      %p139 = scmp.lt.s32.totalorder %s15, 3
      %p140 = pnand %p138, %p139
      %p141 = pneg %p140
      // Predicated region
      $region25: #{tpu_custom_call.1} parent=5 // pred_check
        _
      $region26: #{tpu_custom_call.1} parent=5 // pred_check_branch
        %143 = sbr.rel (%p140) target = $region28
      $region27: #{tpu_custom_call.1} parent=5 // pred_region
        %s144 = ssub.s32 %s15, 1
        %s145 = sand.u32 %s28, 1
        %s146 = scalar_lea.sflag [#allocation3], %s145
        %s147 = sand.u32 %s28, 1
        %s148 = smul.addr %s147, 8
        %s149 = scalar_lea.vmem [#allocation2], %s148
        // Predicated region
        $region29: #{tpu_custom_call.1} parent=27 // pred_check
          %p150 = pneg %p41
        $region30: #{tpu_custom_call.1} parent=27 // pred_check_branch
          %152 = sbr.rel (%p150) target = $region32
        $region31: #{tpu_custom_call.1} parent=27 // pred_region
          %153 = dma.done %s146, 128
        $region32: #{tpu_custom_call.1} parent=27 // pred_fallthru
          _
        // Predicated region
        $region33: #{tpu_custom_call.1} parent=27 // pred_check
          %p154 = pneg %p62
        $region34: #{tpu_custom_call.1} parent=27 // pred_check_branch
          %156 = sbr.rel (%p154) target = $region36
        $region35: #{tpu_custom_call.1} parent=27 // pred_region
          %157 = dma.done [#allocation6], 65536
        $region36: #{tpu_custom_call.1} parent=27 // pred_fallthru
          _
        %s158 = sand.u32 %s28, 1
        %s159 = scalar_lea.sflag [#allocation3], %s158
        %s160 = sand.u32 %s28, 1
        %s161 = smul.addr %s160, 8
        %s162 = scalar_lea.vmem [#allocation2], %s161
        %p163 = pneg %p41
        %p164 = pneg %p38
        %p165 = pneg %p62
        %p166 = pneg %p59
        %p167 = pneg %p88
        %p168 = pneg %p85
        %s169 = sand.u32 %s75, 1
        %s170 = scalar_lea.sflag [#allocation4], %s169
        %s171 = sand.u32 %s75, 1
        %s172 = smul.addr %s171, 8
        %s173 = scalar_lea.vmem [#allocation7], %s172
        %v174 = vlaneseq
        %v175 = vand.u32 %v174, 127
        %v176 = vadd.s32 %v175, 128
        %v177 = vadd.s32 %v175, 256
        %v178 = vadd.s32 %v175, 384
        %v179 = vadd.s32 %v175, 512
        %v180 = vadd.s32 %v175, 640
        %v181 = vadd.s32 %v175, 768
        %v182 = vadd.s32 %v175, 896
        %v183 = vld [vmem:[%s149] sm:$0xff]
        %184 = vset.pattern.permute.xlu0 0
        %185 = vperm.xlu0 %184, %v183
        %v186 = vpop.permute.xlu0 %185
        %vm187 = vcmp.eq.s32.totalorder %v186, %v175
        %vm188 = vcmp.eq.s32.totalorder %v186, %v176
        %vm189 = vcmp.eq.s32.totalorder %v186, %v177
        %vm190 = vcmp.eq.s32.totalorder %v186, %v178
        %vm191 = vcmp.eq.s32.totalorder %v186, %v179
        %vm192 = vcmp.eq.s32.totalorder %v186, %v180
        %vm193 = vcmp.eq.s32.totalorder %v186, %v181
        %vm194 = vcmp.eq.s32.totalorder %v186, %v182
        %v195 = vsel %vm187, 1, 0
        %v196 = vsel %vm188, 1, 0
        %v197 = vsel %vm189, 1, 0
        %v198 = vsel %vm190, 1, 0
        %v199 = vsel %vm191, 1, 0
        %v200 = vsel %vm192, 1, 0
        %v201 = vsel %vm193, 1, 0
        %v202 = vsel %vm194, 1, 0
        %v203 = vcvt.s32.f32 %v195
        %v204 = vcvt.s32.f32 %v196
        %v205 = vcvt.s32.f32 %v197
        %v206 = vcvt.s32.f32 %v198
        %v207 = vcvt.s32.f32 %v199
        %v208 = vcvt.s32.f32 %v200
        %v209 = vcvt.s32.f32 %v201
        %v210 = vcvt.s32.f32 %v202
        %v211 = vld [vmem:[#allocation5] sm:$0xff]
        %v212 = vld [vmem:[#allocation5 + $0x8] sm:$0xff]
        %v213 = vld [vmem:[#allocation5 + $0x10] sm:$0xff]
        %v214 = vld [vmem:[#allocation5 + $0x18] sm:$0xff]
        %v215 = vld [vmem:[#allocation5 + $0x20] sm:$0xff]
        %v216 = vld [vmem:[#allocation5 + $0x28] sm:$0xff]
        %v217 = vld [vmem:[#allocation5 + $0x30] sm:$0xff]
        %v218 = vld [vmem:[#allocation5 + $0x38] sm:$0xff]
        %v219 = vld [vmem:[#allocation5 + $0x40] sm:$0xff]
        %v220 = vld [vmem:[#allocation5 + $0x48] sm:$0xff]
        %v221 = vld [vmem:[#allocation5 + $0x50] sm:$0xff]
        %v222 = vld [vmem:[#allocation5 + $0x58] sm:$0xff]
        %v223 = vld [vmem:[#allocation5 + $0x60] sm:$0xff]
        %v224 = vld [vmem:[#allocation5 + $0x68] sm:$0xff]
        %v225 = vld [vmem:[#allocation5 + $0x70] sm:$0xff]
        %v226 = vld [vmem:[#allocation5 + $0x78] sm:$0xff]
        %v227 = vld [vmem:[#allocation5 + $0x80] sm:$0xff]
        %v228 = vld [vmem:[#allocation5 + $0x88] sm:$0xff]
        %v229 = vld [vmem:[#allocation5 + $0x90] sm:$0xff]
        %v230 = vld [vmem:[#allocation5 + $0x98] sm:$0xff]
        %v231 = vld [vmem:[#allocation5 + $0xa0] sm:$0xff]
        %v232 = vld [vmem:[#allocation5 + $0xa8] sm:$0xff]
        %v233 = vld [vmem:[#allocation5 + $0xb0] sm:$0xff]
        %v234 = vld [vmem:[#allocation5 + $0xb8] sm:$0xff]
        %v235 = vld [vmem:[#allocation5 + $0xc0] sm:$0xff]
        %v236 = vld [vmem:[#allocation5 + $0xc8] sm:$0xff]
        %v237 = vld [vmem:[#allocation5 + $0xd0] sm:$0xff]
        %v238 = vld [vmem:[#allocation5 + $0xd8] sm:$0xff]
        %v239 = vld [vmem:[#allocation5 + $0xe0] sm:$0xff]
        %v240 = vld [vmem:[#allocation5 + $0xe8] sm:$0xff]
        %v241 = vld [vmem:[#allocation5 + $0xf0] sm:$0xff]
        %v242 = vld [vmem:[#allocation5 + $0xf8] sm:$0xff]
        %v243 = vld [vmem:[#allocation5 + $0x100] sm:$0xff]
        %v244 = vld [vmem:[#allocation5 + $0x108] sm:$0xff]
        %v245 = vld [vmem:[#allocation5 + $0x110] sm:$0xff]
        %v246 = vld [vmem:[#allocation5 + $0x118] sm:$0xff]
        %v247 = vld [vmem:[#allocation5 + $0x120] sm:$0xff]
        %v248 = vld [vmem:[#allocation5 + $0x128] sm:$0xff]
        %v249 = vld [vmem:[#allocation5 + $0x130] sm:$0xff]
        %v250 = vld [vmem:[#allocation5 + $0x138] sm:$0xff]
        %v251 = vld [vmem:[#allocation5 + $0x140] sm:$0xff]
        %v252 = vld [vmem:[#allocation5 + $0x148] sm:$0xff]
        %v253 = vld [vmem:[#allocation5 + $0x150] sm:$0xff]
        %v254 = vld [vmem:[#allocation5 + $0x158] sm:$0xff]
        %v255 = vld [vmem:[#allocation5 + $0x160] sm:$0xff]
        %v256 = vld [vmem:[#allocation5 + $0x168] sm:$0xff]
        %v257 = vld [vmem:[#allocation5 + $0x170] sm:$0xff]
        %v258 = vld [vmem:[#allocation5 + $0x178] sm:$0xff]
        %v259 = vld [vmem:[#allocation5 + $0x180] sm:$0xff]
        %v260 = vld [vmem:[#allocation5 + $0x188] sm:$0xff]
        %v261 = vld [vmem:[#allocation5 + $0x190] sm:$0xff]
        %v262 = vld [vmem:[#allocation5 + $0x198] sm:$0xff]
        %v263 = vld [vmem:[#allocation5 + $0x1a0] sm:$0xff]
        %v264 = vld [vmem:[#allocation5 + $0x1a8] sm:$0xff]
        %v265 = vld [vmem:[#allocation5 + $0x1b0] sm:$0xff]
        %v266 = vld [vmem:[#allocation5 + $0x1b8] sm:$0xff]
        %v267 = vld [vmem:[#allocation5 + $0x1c0] sm:$0xff]
        %v268 = vld [vmem:[#allocation5 + $0x1c8] sm:$0xff]
        %v269 = vld [vmem:[#allocation5 + $0x1d0] sm:$0xff]
        %v270 = vld [vmem:[#allocation5 + $0x1d8] sm:$0xff]
        %v271 = vld [vmem:[#allocation5 + $0x1e0] sm:$0xff]
        %v272 = vld [vmem:[#allocation5 + $0x1e8] sm:$0xff]
        %v273 = vld [vmem:[#allocation5 + $0x1f0] sm:$0xff]
        %v274 = vld [vmem:[#allocation5 + $0x1f8] sm:$0xff]
        %v275 = vld [vmem:[#allocation5 + $0x200] sm:$0xff]
        %v276 = vld [vmem:[#allocation5 + $0x208] sm:$0xff]
        %v277 = vld [vmem:[#allocation5 + $0x210] sm:$0xff]
        %v278 = vld [vmem:[#allocation5 + $0x218] sm:$0xff]
        %v279 = vld [vmem:[#allocation5 + $0x220] sm:$0xff]
        %v280 = vld [vmem:[#allocation5 + $0x228] sm:$0xff]
        %v281 = vld [vmem:[#allocation5 + $0x230] sm:$0xff]
        %v282 = vld [vmem:[#allocation5 + $0x238] sm:$0xff]
        %v283 = vld [vmem:[#allocation5 + $0x240] sm:$0xff]
        %v284 = vld [vmem:[#allocation5 + $0x248] sm:$0xff]
        %v285 = vld [vmem:[#allocation5 + $0x250] sm:$0xff]
        %v286 = vld [vmem:[#allocation5 + $0x258] sm:$0xff]
        %v287 = vld [vmem:[#allocation5 + $0x260] sm:$0xff]
        %v288 = vld [vmem:[#allocation5 + $0x268] sm:$0xff]
        %v289 = vld [vmem:[#allocation5 + $0x270] sm:$0xff]
        %v290 = vld [vmem:[#allocation5 + $0x278] sm:$0xff]
        %v291 = vld [vmem:[#allocation5 + $0x280] sm:$0xff]
        %v292 = vld [vmem:[#allocation5 + $0x288] sm:$0xff]
        %v293 = vld [vmem:[#allocation5 + $0x290] sm:$0xff]
        %v294 = vld [vmem:[#allocation5 + $0x298] sm:$0xff]
        %v295 = vld [vmem:[#allocation5 + $0x2a0] sm:$0xff]
        %v296 = vld [vmem:[#allocation5 + $0x2a8] sm:$0xff]
        %v297 = vld [vmem:[#allocation5 + $0x2b0] sm:$0xff]
        %v298 = vld [vmem:[#allocation5 + $0x2b8] sm:$0xff]
        %v299 = vld [vmem:[#allocation5 + $0x2c0] sm:$0xff]
        %v300 = vld [vmem:[#allocation5 + $0x2c8] sm:$0xff]
        %v301 = vld [vmem:[#allocation5 + $0x2d0] sm:$0xff]
        %v302 = vld [vmem:[#allocation5 + $0x2d8] sm:$0xff]
        %v303 = vld [vmem:[#allocation5 + $0x2e0] sm:$0xff]
        %v304 = vld [vmem:[#allocation5 + $0x2e8] sm:$0xff]
        %v305 = vld [vmem:[#allocation5 + $0x2f0] sm:$0xff]
        %v306 = vld [vmem:[#allocation5 + $0x2f8] sm:$0xff]
        %v307 = vld [vmem:[#allocation5 + $0x300] sm:$0xff]
        %v308 = vld [vmem:[#allocation5 + $0x308] sm:$0xff]
        %v309 = vld [vmem:[#allocation5 + $0x310] sm:$0xff]
        %v310 = vld [vmem:[#allocation5 + $0x318] sm:$0xff]
        %v311 = vld [vmem:[#allocation5 + $0x320] sm:$0xff]
        %v312 = vld [vmem:[#allocation5 + $0x328] sm:$0xff]
        %v313 = vld [vmem:[#allocation5 + $0x330] sm:$0xff]
        %v314 = vld [vmem:[#allocation5 + $0x338] sm:$0xff]
        %v315 = vld [vmem:[#allocation5 + $0x340] sm:$0xff]
        %v316 = vld [vmem:[#allocation5 + $0x348] sm:$0xff]
        %v317 = vld [vmem:[#allocation5 + $0x350] sm:$0xff]
        %v318 = vld [vmem:[#allocation5 + $0x358] sm:$0xff]
        %v319 = vld [vmem:[#allocation5 + $0x360] sm:$0xff]
        %v320 = vld [vmem:[#allocation5 + $0x368] sm:$0xff]
        %v321 = vld [vmem:[#allocation5 + $0x370] sm:$0xff]
        %v322 = vld [vmem:[#allocation5 + $0x378] sm:$0xff]
        %v323 = vld [vmem:[#allocation5 + $0x380] sm:$0xff]
        %v324 = vld [vmem:[#allocation5 + $0x388] sm:$0xff]
        %v325 = vld [vmem:[#allocation5 + $0x390] sm:$0xff]
        %v326 = vld [vmem:[#allocation5 + $0x398] sm:$0xff]
        %v327 = vld [vmem:[#allocation5 + $0x3a0] sm:$0xff]
        %v328 = vld [vmem:[#allocation5 + $0x3a8] sm:$0xff]
        %v329 = vld [vmem:[#allocation5 + $0x3b0] sm:$0xff]
        %v330 = vld [vmem:[#allocation5 + $0x3b8] sm:$0xff]
        %v331 = vld [vmem:[#allocation5 + $0x3c0] sm:$0xff]
        %v332 = vld [vmem:[#allocation5 + $0x3c8] sm:$0xff]
        %v333 = vld [vmem:[#allocation5 + $0x3d0] sm:$0xff]
        %v334 = vld [vmem:[#allocation5 + $0x3d8] sm:$0xff]
        %v335 = vld [vmem:[#allocation5 + $0x3e0] sm:$0xff]
        %v336 = vld [vmem:[#allocation5 + $0x3e8] sm:$0xff]
        %v337 = vld [vmem:[#allocation5 + $0x3f0] sm:$0xff]
        %v338 = vld [vmem:[#allocation5 + $0x3f8] sm:$0xff]
        %339 = vset.pattern.permute.xlu0 1
        %340 = vperm.xlu0 %339, %v183
        %v341 = vpop.permute.xlu0 %340
        %vm342 = vcmp.eq.s32.totalorder %v341, %v175
        %vm343 = vcmp.eq.s32.totalorder %v341, %v176
        %vm344 = vcmp.eq.s32.totalorder %v341, %v177
        %vm345 = vcmp.eq.s32.totalorder %v341, %v178
        %vm346 = vcmp.eq.s32.totalorder %v341, %v179
        %vm347 = vcmp.eq.s32.totalorder %v341, %v180
        %vm348 = vcmp.eq.s32.totalorder %v341, %v181
        %vm349 = vcmp.eq.s32.totalorder %v341, %v182
        %v350 = vsel %vm342, 1, 0
        %v351 = vsel %vm343, 1, 0
        %v352 = vsel %vm344, 1, 0
        %v353 = vsel %vm345, 1, 0
        %v354 = vsel %vm346, 1, 0
        %v355 = vsel %vm347, 1, 0
        %v356 = vsel %vm348, 1, 0
        %v357 = vsel %vm349, 1, 0
        %v358 = vcvt.s32.f32 %v350
        %v359 = vcvt.s32.f32 %v351
        %v360 = vcvt.s32.f32 %v352
        %v361 = vcvt.s32.f32 %v353
        %v362 = vcvt.s32.f32 %v354
        %v363 = vcvt.s32.f32 %v355
        %v364 = vcvt.s32.f32 %v356
        %v365 = vcvt.s32.f32 %v357
        %s366 = scalar_lea.vmem [#allocation5], 1024
        %v367 = vld [vmem:[%s366] sm:$0xff]
        %v368 = vld [vmem:[%s366 + $0x8] sm:$0xff]
        %v369 = vld [vmem:[%s366 + $0x10] sm:$0xff]
        %v370 = vld [vmem:[%s366 + $0x18] sm:$0xff]
        %v371 = vld [vmem:[%s366 + $0x20] sm:$0xff]
        %v372 = vld [vmem:[%s366 + $0x28] sm:$0xff]
        %v373 = vld [vmem:[%s366 + $0x30] sm:$0xff]
        %v374 = vld [vmem:[%s366 + $0x38] sm:$0xff]
        %v375 = vld [vmem:[%s366 + $0x40] sm:$0xff]
        %v376 = vld [vmem:[%s366 + $0x48] sm:$0xff]
        %v377 = vld [vmem:[%s366 + $0x50] sm:$0xff]
        %v378 = vld [vmem:[%s366 + $0x58] sm:$0xff]
        %v379 = vld [vmem:[%s366 + $0x60] sm:$0xff]
        %v380 = vld [vmem:[%s366 + $0x68] sm:$0xff]
        %v381 = vld [vmem:[%s366 + $0x70] sm:$0xff]
        %v382 = vld [vmem:[%s366 + $0x78] sm:$0xff]
        %v383 = vld [vmem:[%s366 + $0x80] sm:$0xff]
        %v384 = vld [vmem:[%s366 + $0x88] sm:$0xff]
        %v385 = vld [vmem:[%s366 + $0x90] sm:$0xff]
        %v386 = vld [vmem:[%s366 + $0x98] sm:$0xff]
        %v387 = vld [vmem:[%s366 + $0xa0] sm:$0xff]
        %v388 = vld [vmem:[%s366 + $0xa8] sm:$0xff]
        %v389 = vld [vmem:[%s366 + $0xb0] sm:$0xff]
        %v390 = vld [vmem:[%s366 + $0xb8] sm:$0xff]
        %v391 = vld [vmem:[%s366 + $0xc0] sm:$0xff]
        %v392 = vld [vmem:[%s366 + $0xc8] sm:$0xff]
        %v393 = vld [vmem:[%s366 + $0xd0] sm:$0xff]
        %v394 = vld [vmem:[%s366 + $0xd8] sm:$0xff]
        %v395 = vld [vmem:[%s366 + $0xe0] sm:$0xff]
        %v396 = vld [vmem:[%s366 + $0xe8] sm:$0xff]
        %v397 = vld [vmem:[%s366 + $0xf0] sm:$0xff]
        %v398 = vld [vmem:[%s366 + $0xf8] sm:$0xff]
        %v399 = vld [vmem:[%s366 + $0x100] sm:$0xff]
        %v400 = vld [vmem:[%s366 + $0x108] sm:$0xff]
        %v401 = vld [vmem:[%s366 + $0x110] sm:$0xff]
        %v402 = vld [vmem:[%s366 + $0x118] sm:$0xff]
        %v403 = vld [vmem:[%s366 + $0x120] sm:$0xff]
        %v404 = vld [vmem:[%s366 + $0x128] sm:$0xff]
        %v405 = vld [vmem:[%s366 + $0x130] sm:$0xff]
        %v406 = vld [vmem:[%s366 + $0x138] sm:$0xff]
        %v407 = vld [vmem:[%s366 + $0x140] sm:$0xff]
        %v408 = vld [vmem:[%s366 + $0x148] sm:$0xff]
        %v409 = vld [vmem:[%s366 + $0x150] sm:$0xff]
        %v410 = vld [vmem:[%s366 + $0x158] sm:$0xff]
        %v411 = vld [vmem:[%s366 + $0x160] sm:$0xff]
        %v412 = vld [vmem:[%s366 + $0x168] sm:$0xff]
        %v413 = vld [vmem:[%s366 + $0x170] sm:$0xff]
        %v414 = vld [vmem:[%s366 + $0x178] sm:$0xff]
        %v415 = vld [vmem:[%s366 + $0x180] sm:$0xff]
        %v416 = vld [vmem:[%s366 + $0x188] sm:$0xff]
        %v417 = vld [vmem:[%s366 + $0x190] sm:$0xff]
        %v418 = vld [vmem:[%s366 + $0x198] sm:$0xff]
        %v419 = vld [vmem:[%s366 + $0x1a0] sm:$0xff]
        %v420 = vld [vmem:[%s366 + $0x1a8] sm:$0xff]
        %v421 = vld [vmem:[%s366 + $0x1b0] sm:$0xff]
        %v422 = vld [vmem:[%s366 + $0x1b8] sm:$0xff]
        %v423 = vld [vmem:[%s366 + $0x1c0] sm:$0xff]
        %v424 = vld [vmem:[%s366 + $0x1c8] sm:$0xff]
        %v425 = vld [vmem:[%s366 + $0x1d0] sm:$0xff]
        %v426 = vld [vmem:[%s366 + $0x1d8] sm:$0xff]
        %v427 = vld [vmem:[%s366 + $0x1e0] sm:$0xff]
        %v428 = vld [vmem:[%s366 + $0x1e8] sm:$0xff]
        %v429 = vld [vmem:[%s366 + $0x1f0] sm:$0xff]
        %v430 = vld [vmem:[%s366 + $0x1f8] sm:$0xff]
        %v431 = vld [vmem:[%s366 + $0x200] sm:$0xff]
        %v432 = vld [vmem:[%s366 + $0x208] sm:$0xff]
        %v433 = vld [vmem:[%s366 + $0x210] sm:$0xff]
        %v434 = vld [vmem:[%s366 + $0x218] sm:$0xff]
        %v435 = vld [vmem:[%s366 + $0x220] sm:$0xff]
        %v436 = vld [vmem:[%s366 + $0x228] sm:$0xff]
        %v437 = vld [vmem:[%s366 + $0x230] sm:$0xff]
        %v438 = vld [vmem:[%s366 + $0x238] sm:$0xff]
        %v439 = vld [vmem:[%s366 + $0x240] sm:$0xff]
        %v440 = vld [vmem:[%s366 + $0x248] sm:$0xff]
        %v441 = vld [vmem:[%s366 + $0x250] sm:$0xff]
        %v442 = vld [vmem:[%s366 + $0x258] sm:$0xff]
        %v443 = vld [vmem:[%s366 + $0x260] sm:$0xff]
        %v444 = vld [vmem:[%s366 + $0x268] sm:$0xff]
        %v445 = vld [vmem:[%s366 + $0x270] sm:$0xff]
        %v446 = vld [vmem:[%s366 + $0x278] sm:$0xff]
        %v447 = vld [vmem:[%s366 + $0x280] sm:$0xff]
        %v448 = vld [vmem:[%s366 + $0x288] sm:$0xff]
        %v449 = vld [vmem:[%s366 + $0x290] sm:$0xff]
        %v450 = vld [vmem:[%s366 + $0x298] sm:$0xff]
        %v451 = vld [vmem:[%s366 + $0x2a0] sm:$0xff]
        %v452 = vld [vmem:[%s366 + $0x2a8] sm:$0xff]
        %v453 = vld [vmem:[%s366 + $0x2b0] sm:$0xff]
        %v454 = vld [vmem:[%s366 + $0x2b8] sm:$0xff]
        %v455 = vld [vmem:[%s366 + $0x2c0] sm:$0xff]
        %v456 = vld [vmem:[%s366 + $0x2c8] sm:$0xff]
        %v457 = vld [vmem:[%s366 + $0x2d0] sm:$0xff]
        %v458 = vld [vmem:[%s366 + $0x2d8] sm:$0xff]
        %v459 = vld [vmem:[%s366 + $0x2e0] sm:$0xff]
        %v460 = vld [vmem:[%s366 + $0x2e8] sm:$0xff]
        %v461 = vld [vmem:[%s366 + $0x2f0] sm:$0xff]
        %v462 = vld [vmem:[%s366 + $0x2f8] sm:$0xff]
        %v463 = vld [vmem:[%s366 + $0x300] sm:$0xff]
        %v464 = vld [vmem:[%s366 + $0x308] sm:$0xff]
        %v465 = vld [vmem:[%s366 + $0x310] sm:$0xff]
        %v466 = vld [vmem:[%s366 + $0x318] sm:$0xff]
        %v467 = vld [vmem:[%s366 + $0x320] sm:$0xff]
        %v468 = vld [vmem:[%s366 + $0x328] sm:$0xff]
        %v469 = vld [vmem:[%s366 + $0x330] sm:$0xff]
        %v470 = vld [vmem:[%s366 + $0x338] sm:$0xff]
        %v471 = vld [vmem:[%s366 + $0x340] sm:$0xff]
        %v472 = vld [vmem:[%s366 + $0x348] sm:$0xff]
        %v473 = vld [vmem:[%s366 + $0x350] sm:$0xff]
        %v474 = vld [vmem:[%s366 + $0x358] sm:$0xff]
        %v475 = vld [vmem:[%s366 + $0x360] sm:$0xff]
        %v476 = vld [vmem:[%s366 + $0x368] sm:$0xff]
        %v477 = vld [vmem:[%s366 + $0x370] sm:$0xff]
        %v478 = vld [vmem:[%s366 + $0x378] sm:$0xff]
        %v479 = vld [vmem:[%s366 + $0x380] sm:$0xff]
        %v480 = vld [vmem:[%s366 + $0x388] sm:$0xff]
        %v481 = vld [vmem:[%s366 + $0x390] sm:$0xff]
        %v482 = vld [vmem:[%s366 + $0x398] sm:$0xff]
        %v483 = vld [vmem:[%s366 + $0x3a0] sm:$0xff]
        %v484 = vld [vmem:[%s366 + $0x3a8] sm:$0xff]
        %v485 = vld [vmem:[%s366 + $0x3b0] sm:$0xff]
        %v486 = vld [vmem:[%s366 + $0x3b8] sm:$0xff]
        %v487 = vld [vmem:[%s366 + $0x3c0] sm:$0xff]
        %v488 = vld [vmem:[%s366 + $0x3c8] sm:$0xff]
        %v489 = vld [vmem:[%s366 + $0x3d0] sm:$0xff]
        %v490 = vld [vmem:[%s366 + $0x3d8] sm:$0xff]
        %v491 = vld [vmem:[%s366 + $0x3e0] sm:$0xff]
        %v492 = vld [vmem:[%s366 + $0x3e8] sm:$0xff]
        %v493 = vld [vmem:[%s366 + $0x3f0] sm:$0xff]
        %v494 = vld [vmem:[%s366 + $0x3f8] sm:$0xff]
        %495 = vmatprep.subr.mxu0 0.0
        %496 = vmatpush1.msra.mxu0 %v367
        %497 = vmatprep.subr.mxu0 0.0
        %498 = vmatpush1.msra.mxu0 %v368
        %499 = vmatprep.subr.mxu0 0.0
        %500 = vmatpush1.msra.mxu0 %v369
        %501 = vmatprep.subr.mxu0 0.0
        %502 = vmatpush1.msra.mxu0 %v370
        %503 = vmatprep.subr.mxu0 0.0
        %504 = vmatpush1.msra.mxu0 %v371
        %505 = vmatprep.subr.mxu0 0.0
        %506 = vmatpush1.msra.mxu0 %v372
        %507 = vmatprep.subr.mxu0 0.0
        %508 = vmatpush1.msra.mxu0 %v373
        %509 = vmatprep.subr.mxu0 0.0
        %510 = vmatpush1.msra.mxu0 %v374
        %511 = vmatprep.subr.mxu0 0.0
        %512 = vmatpush1.msra.mxu0 %v375
        %513 = vmatprep.subr.mxu0 0.0
        %514 = vmatpush1.msra.mxu0 %v376
        %515 = vmatprep.subr.mxu0 0.0
        %516 = vmatpush1.msra.mxu0 %v377
        %517 = vmatprep.subr.mxu0 0.0
        %518 = vmatpush1.msra.mxu0 %v378
        %519 = vmatprep.subr.mxu0 0.0
        %520 = vmatpush1.msra.mxu0 %v379
        %521 = vmatprep.subr.mxu0 0.0
        %522 = vmatpush1.msra.mxu0 %v380
        %523 = vmatprep.subr.mxu0 0.0
        %524 = vmatpush1.msra.mxu0 %v381
        %525 = vmatprep.subr.mxu0 0.0
        %526 = vmatpush1.msra.mxu0 %v382
        %527 = vmatprep.subr.mxu0 0.0
        %528 = vmatpush1.msra.mxu0 %v383
        %529 = vmatprep.subr.mxu0 0.0
        %530 = vmatpush1.msra.mxu0 %v384
        %531 = vmatprep.subr.mxu0 0.0
        %532 = vmatpush1.msra.mxu0 %v385
        %533 = vmatprep.subr.mxu0 0.0
        %534 = vmatpush1.msra.mxu0 %v386
        %535 = vmatprep.subr.mxu0 0.0
        %536 = vmatpush1.msra.mxu0 %v387
        %537 = vmatprep.subr.mxu0 0.0
        %538 = vmatpush1.msra.mxu0 %v388
        %539 = vmatprep.subr.mxu0 0.0
        %540 = vmatpush1.msra.mxu0 %v389
        %541 = vmatprep.subr.mxu0 0.0
        %542 = vmatpush1.msra.mxu0 %v390
        %543 = vmatprep.subr.mxu0 0.0
        %544 = vmatpush1.msra.mxu0 %v391
        %545 = vmatprep.subr.mxu0 0.0
        %546 = vmatpush1.msra.mxu0 %v392
        %547 = vmatprep.subr.mxu0 0.0
        %548 = vmatpush1.msra.mxu0 %v393
        %549 = vmatprep.subr.mxu0 0.0
        %550 = vmatpush1.msra.mxu0 %v394
        %551 = vmatprep.subr.mxu0 0.0
        %552 = vmatpush1.msra.mxu0 %v395
        %553 = vmatprep.subr.mxu0 0.0
        %554 = vmatpush1.msra.mxu0 %v396
        %555 = vmatprep.subr.mxu0 0.0
        %556 = vmatpush1.msra.mxu0 %v397
        %557 = vmatprep.subr.mxu0 0.0
        %558 = vmatpush1.msra.mxu0 %v398
        %559 = vmatprep.mubr.f32.mxu0 %v359
        %560 = vmatmul.mubr.f32.gmra.mrb[0].mxu0 %v358
        %v561 = vpop.f32.mrb[0].mxu0
        %v562 = vadd.f32 0.0, %v561
        %v563 = vpop.f32.mrb[0].mxu0
        %564 = vdwg.mxu0
        %565 = vmatprep.subr.mxu0 0.0
        %566 = vmatpush1.msra.mxu0 %v399
        %567 = vmatprep.subr.mxu0 0.0
        %568 = vmatpush1.msra.mxu0 %v400
        %569 = vmatprep.subr.mxu0 0.0
        %570 = vmatpush1.msra.mxu0 %v401
        %571 = vmatprep.subr.mxu0 0.0
        %572 = vmatpush1.msra.mxu0 %v402
        %573 = vmatprep.subr.mxu0 0.0
        %574 = vmatpush1.msra.mxu0 %v403
        %575 = vmatprep.subr.mxu0 0.0
        %576 = vmatpush1.msra.mxu0 %v404
        %577 = vmatprep.subr.mxu0 0.0
        %578 = vmatpush1.msra.mxu0 %v405
        %579 = vmatprep.subr.mxu0 0.0
        %580 = vmatpush1.msra.mxu0 %v406
        %581 = vmatprep.subr.mxu0 0.0
        %582 = vmatpush1.msra.mxu0 %v407
        %583 = vmatprep.subr.mxu0 0.0
        %584 = vmatpush1.msra.mxu0 %v408
        %585 = vmatprep.subr.mxu0 0.0
        %586 = vmatpush1.msra.mxu0 %v409
        %587 = vmatprep.subr.mxu0 0.0
        %588 = vmatpush1.msra.mxu0 %v410
        %589 = vmatprep.subr.mxu0 0.0
        %590 = vmatpush1.msra.mxu0 %v411
        %591 = vmatprep.subr.mxu0 0.0
        %592 = vmatpush1.msra.mxu0 %v412
        %593 = vmatprep.subr.mxu0 0.0
        %594 = vmatpush1.msra.mxu0 %v413
        %595 = vmatprep.subr.mxu0 0.0
        %596 = vmatpush1.msra.mxu0 %v414
        %597 = vmatprep.subr.mxu0 0.0
        %598 = vmatpush1.msra.mxu0 %v415
        %599 = vmatprep.subr.mxu0 0.0
        %600 = vmatpush1.msra.mxu0 %v416
        %601 = vmatprep.subr.mxu0 0.0
        %602 = vmatpush1.msra.mxu0 %v417
        %603 = vmatprep.subr.mxu0 0.0
        %604 = vmatpush1.msra.mxu0 %v418
        %605 = vmatprep.subr.mxu0 0.0
        %606 = vmatpush1.msra.mxu0 %v419
        %607 = vmatprep.subr.mxu0 0.0
        %608 = vmatpush1.msra.mxu0 %v420
        %609 = vmatprep.subr.mxu0 0.0
        %610 = vmatpush1.msra.mxu0 %v421
        %611 = vmatprep.subr.mxu0 0.0
        %612 = vmatpush1.msra.mxu0 %v422
        %613 = vmatprep.subr.mxu0 0.0
        %614 = vmatpush1.msra.mxu0 %v423
        %615 = vmatprep.subr.mxu0 0.0
        %616 = vmatpush1.msra.mxu0 %v424
        %617 = vmatprep.subr.mxu0 0.0
        %618 = vmatpush1.msra.mxu0 %v425
        %619 = vmatprep.subr.mxu0 0.0
        %620 = vmatpush1.msra.mxu0 %v426
        %621 = vmatprep.subr.mxu0 0.0
        %622 = vmatpush1.msra.mxu0 %v427
        %623 = vmatprep.subr.mxu0 0.0
        %624 = vmatpush1.msra.mxu0 %v428
        %625 = vmatprep.subr.mxu0 0.0
        %626 = vmatpush1.msra.mxu0 %v429
        %627 = vmatprep.subr.mxu0 0.0
        %628 = vmatpush1.msra.mxu0 %v430
        %629 = vmatprep.mubr.f32.mxu0 %v361
        %630 = vmatmul.mubr.f32.gmra.mrb[0].mxu0 %v360
        %v631 = vpop.f32.mrb[0].mxu0
        %v632 = vadd.f32 %v562, %v631
        %v633 = vpop.f32.mrb[0].mxu0
        %634 = vdwg.mxu0
        %635 = vmatprep.subr.mxu0 0.0
        %636 = vmatpush1.msra.mxu0 %v431
        %637 = vmatprep.subr.mxu0 0.0
        %638 = vmatpush1.msra.mxu0 %v432
        %639 = vmatprep.subr.mxu0 0.0
        %640 = vmatpush1.msra.mxu0 %v433
        %641 = vmatprep.subr.mxu0 0.0
        %642 = vmatpush1.msra.mxu0 %v434
        %643 = vmatprep.subr.mxu0 0.0
        %644 = vmatpush1.msra.mxu0 %v435
        %645 = vmatprep.subr.mxu0 0.0
        %646 = vmatpush1.msra.mxu0 %v436
        %647 = vmatprep.subr.mxu0 0.0
        %648 = vmatpush1.msra.mxu0 %v437
        %649 = vmatprep.subr.mxu0 0.0
        %650 = vmatpush1.msra.mxu0 %v438
        %651 = vmatprep.subr.mxu0 0.0
        %652 = vmatpush1.msra.mxu0 %v439
        %653 = vmatprep.subr.mxu0 0.0
        %654 = vmatpush1.msra.mxu0 %v440
        %655 = vmatprep.subr.mxu0 0.0
        %656 = vmatpush1.msra.mxu0 %v441
        %657 = vmatprep.subr.mxu0 0.0
        %658 = vmatpush1.msra.mxu0 %v442
        %659 = vmatprep.subr.mxu0 0.0
        %660 = vmatpush1.msra.mxu0 %v443
        %661 = vmatprep.subr.mxu0 0.0
        %662 = vmatpush1.msra.mxu0 %v444
        %663 = vmatprep.subr.mxu0 0.0
        %664 = vmatpush1.msra.mxu0 %v445
        %665 = vmatprep.subr.mxu0 0.0
        %666 = vmatpush1.msra.mxu0 %v446
        %667 = vmatprep.subr.mxu0 0.0
        %668 = vmatpush1.msra.mxu0 %v447
        %669 = vmatprep.subr.mxu0 0.0
        %670 = vmatpush1.msra.mxu0 %v448
        %671 = vmatprep.subr.mxu0 0.0
        %672 = vmatpush1.msra.mxu0 %v449
        %673 = vmatprep.subr.mxu0 0.0
        %674 = vmatpush1.msra.mxu0 %v450
        %675 = vmatprep.subr.mxu0 0.0
        %676 = vmatpush1.msra.mxu0 %v451
        %677 = vmatprep.subr.mxu0 0.0
        %678 = vmatpush1.msra.mxu0 %v452
        %679 = vmatprep.subr.mxu0 0.0
        %680 = vmatpush1.msra.mxu0 %v453
        %681 = vmatprep.subr.mxu0 0.0
        %682 = vmatpush1.msra.mxu0 %v454
        %683 = vmatprep.subr.mxu0 0.0
        %684 = vmatpush1.msra.mxu0 %v455
        %685 = vmatprep.subr.mxu0 0.0
        %686 = vmatpush1.msra.mxu0 %v456
        %687 = vmatprep.subr.mxu0 0.0
        %688 = vmatpush1.msra.mxu0 %v457
        %689 = vmatprep.subr.mxu0 0.0
        %690 = vmatpush1.msra.mxu0 %v458
        %691 = vmatprep.subr.mxu0 0.0
        %692 = vmatpush1.msra.mxu0 %v459
        %693 = vmatprep.subr.mxu0 0.0
        %694 = vmatpush1.msra.mxu0 %v460
        %695 = vmatprep.subr.mxu0 0.0
        %696 = vmatpush1.msra.mxu0 %v461
        %697 = vmatprep.subr.mxu0 0.0
        %698 = vmatpush1.msra.mxu0 %v462
        %699 = vmatprep.mubr.f32.mxu0 %v363
        %700 = vmatmul.mubr.f32.gmra.mrb[0].mxu0 %v362
        %v701 = vpop.f32.mrb[0].mxu0
        %v702 = vadd.f32 %v632, %v701
        %v703 = vpop.f32.mrb[0].mxu0
        %704 = vdwg.mxu0
        %705 = vmatprep.subr.mxu0 0.0
        %706 = vmatpush1.msra.mxu0 %v463
        %707 = vmatprep.subr.mxu0 0.0
        %708 = vmatpush1.msra.mxu0 %v464
        %709 = vmatprep.subr.mxu0 0.0
        %710 = vmatpush1.msra.mxu0 %v465
        %711 = vmatprep.subr.mxu0 0.0
        %712 = vmatpush1.msra.mxu0 %v466
        %713 = vmatprep.subr.mxu0 0.0
        %714 = vmatpush1.msra.mxu0 %v467
        %715 = vmatprep.subr.mxu0 0.0
        %716 = vmatpush1.msra.mxu0 %v468
        %717 = vmatprep.subr.mxu0 0.0
        %718 = vmatpush1.msra.mxu0 %v469
        %719 = vmatprep.subr.mxu0 0.0
        %720 = vmatpush1.msra.mxu0 %v470
        %721 = vmatprep.subr.mxu0 0.0
        %722 = vmatpush1.msra.mxu0 %v471
        %723 = vmatprep.subr.mxu0 0.0
        %724 = vmatpush1.msra.mxu0 %v472
        %725 = vmatprep.subr.mxu0 0.0
        %726 = vmatpush1.msra.mxu0 %v473
        %727 = vmatprep.subr.mxu0 0.0
        %728 = vmatpush1.msra.mxu0 %v474
        %729 = vmatprep.subr.mxu0 0.0
        %730 = vmatpush1.msra.mxu0 %v475
        %731 = vmatprep.subr.mxu0 0.0
        %732 = vmatpush1.msra.mxu0 %v476
        %733 = vmatprep.subr.mxu0 0.0
        %734 = vmatpush1.msra.mxu0 %v477
        %735 = vmatprep.subr.mxu0 0.0
        %736 = vmatpush1.msra.mxu0 %v478
        %737 = vmatprep.subr.mxu0 0.0
        %738 = vmatpush1.msra.mxu0 %v479
        %739 = vmatprep.subr.mxu0 0.0
        %740 = vmatpush1.msra.mxu0 %v480
        %741 = vmatprep.subr.mxu0 0.0
        %742 = vmatpush1.msra.mxu0 %v481
        %743 = vmatprep.subr.mxu0 0.0
        %744 = vmatpush1.msra.mxu0 %v482
        %745 = vmatprep.subr.mxu0 0.0
        %746 = vmatpush1.msra.mxu0 %v483
        %747 = vmatprep.subr.mxu0 0.0
        %748 = vmatpush1.msra.mxu0 %v484
        %749 = vmatprep.subr.mxu0 0.0
        %750 = vmatpush1.msra.mxu0 %v485
        %751 = vmatprep.subr.mxu0 0.0
        %752 = vmatpush1.msra.mxu0 %v486
        %753 = vmatprep.subr.mxu0 0.0
        %754 = vmatpush1.msra.mxu0 %v487
        %755 = vmatprep.subr.mxu0 0.0
        %756 = vmatpush1.msra.mxu0 %v488
        %757 = vmatprep.subr.mxu0 0.0
        %758 = vmatpush1.msra.mxu0 %v489
        %759 = vmatprep.subr.mxu0 0.0
        %760 = vmatpush1.msra.mxu0 %v490
        %761 = vmatprep.subr.mxu0 0.0
        %762 = vmatpush1.msra.mxu0 %v491
        %763 = vmatprep.subr.mxu0 0.0
        %764 = vmatpush1.msra.mxu0 %v492
        %765 = vmatprep.subr.mxu0 0.0
        %766 = vmatpush1.msra.mxu0 %v493
        %767 = vmatprep.subr.mxu0 0.0
        %768 = vmatpush1.msra.mxu0 %v494
        %769 = vmatprep.mubr.f32.mxu0 %v365
        %770 = vmatmul.mubr.f32.gmra.mrb[0].mxu0 %v364
        %v771 = vpop.f32.mrb[0].mxu0
        %v772 = vadd.f32 %v702, %v771
        %v773 = vpop.f32.mrb[0].mxu0
        %774 = vdwg.mxu0
        %775 = vmatprep.subr.mxu0 0.0
        %776 = vmatpush1.msra.mxu0 %v211
        %777 = vmatprep.subr.mxu0 0.0
        %778 = vmatpush1.msra.mxu0 %v212
        %779 = vmatprep.subr.mxu0 0.0
        %780 = vmatpush1.msra.mxu0 %v213
        %781 = vmatprep.subr.mxu0 0.0
        %782 = vmatpush1.msra.mxu0 %v214
        %783 = vmatprep.subr.mxu0 0.0
        %784 = vmatpush1.msra.mxu0 %v215
        %785 = vmatprep.subr.mxu0 0.0
        %786 = vmatpush1.msra.mxu0 %v216
        %787 = vmatprep.subr.mxu0 0.0
        %788 = vmatpush1.msra.mxu0 %v217
        %789 = vmatprep.subr.mxu0 0.0
        %790 = vmatpush1.msra.mxu0 %v218
        %791 = vmatprep.subr.mxu0 0.0
        %792 = vmatpush1.msra.mxu0 %v219
        %793 = vmatprep.subr.mxu0 0.0
        %794 = vmatpush1.msra.mxu0 %v220
        %795 = vmatprep.subr.mxu0 0.0
        %796 = vmatpush1.msra.mxu0 %v221
        %797 = vmatprep.subr.mxu0 0.0
        %798 = vmatpush1.msra.mxu0 %v222
        %799 = vmatprep.subr.mxu0 0.0
        %800 = vmatpush1.msra.mxu0 %v223
        %801 = vmatprep.subr.mxu0 0.0
        %802 = vmatpush1.msra.mxu0 %v224
        %803 = vmatprep.subr.mxu0 0.0
        %804 = vmatpush1.msra.mxu0 %v225
        %805 = vmatprep.subr.mxu0 0.0
        %806 = vmatpush1.msra.mxu0 %v226
        %807 = vmatprep.subr.mxu0 0.0
        %808 = vmatpush1.msra.mxu0 %v227
        %809 = vmatprep.subr.mxu0 0.0
        %810 = vmatpush1.msra.mxu0 %v228
        %811 = vmatprep.subr.mxu0 0.0
        %812 = vmatpush1.msra.mxu0 %v229
        %813 = vmatprep.subr.mxu0 0.0
        %814 = vmatpush1.msra.mxu0 %v230
        %815 = vmatprep.subr.mxu0 0.0
        %816 = vmatpush1.msra.mxu0 %v231
        %817 = vmatprep.subr.mxu0 0.0
        %818 = vmatpush1.msra.mxu0 %v232
        %819 = vmatprep.subr.mxu0 0.0
        %820 = vmatpush1.msra.mxu0 %v233
        %821 = vmatprep.subr.mxu0 0.0
        %822 = vmatpush1.msra.mxu0 %v234
        %823 = vmatprep.subr.mxu0 0.0
        %824 = vmatpush1.msra.mxu0 %v235
        %825 = vmatprep.subr.mxu0 0.0
        %826 = vmatpush1.msra.mxu0 %v236
        %827 = vmatprep.subr.mxu0 0.0
        %828 = vmatpush1.msra.mxu0 %v237
        %829 = vmatprep.subr.mxu0 0.0
        %830 = vmatpush1.msra.mxu0 %v238
        %831 = vmatprep.subr.mxu0 0.0
        %832 = vmatpush1.msra.mxu0 %v239
        %833 = vmatprep.subr.mxu0 0.0
        %834 = vmatpush1.msra.mxu0 %v240
        %835 = vmatprep.subr.mxu0 0.0
        %836 = vmatpush1.msra.mxu0 %v241
        %837 = vmatprep.subr.mxu0 0.0
        %838 = vmatpush1.msra.mxu0 %v242
        %839 = vmatprep.mubr.f32.mxu0 %v204
        %840 = vmatmul.mubr.f32.gmra.mrb[0].mxu0 %v203
        %v841 = vpop.f32.mrb[0].mxu0
        %v842 = vadd.f32 %v772, %v841
        %v843 = vpop.f32.mrb[0].mxu0
        %844 = vdwg.mxu0
        %845 = vmatprep.subr.mxu0 0.0
        %846 = vmatpush1.msra.mxu0 %v243
        %847 = vmatprep.subr.mxu0 0.0
        %848 = vmatpush1.msra.mxu0 %v244
        %849 = vmatprep.subr.mxu0 0.0
        %850 = vmatpush1.msra.mxu0 %v245
        %851 = vmatprep.subr.mxu0 0.0
        %852 = vmatpush1.msra.mxu0 %v246
        %853 = vmatprep.subr.mxu0 0.0
        %854 = vmatpush1.msra.mxu0 %v247
        %855 = vmatprep.subr.mxu0 0.0
        %856 = vmatpush1.msra.mxu0 %v248
        %857 = vmatprep.subr.mxu0 0.0
        %858 = vmatpush1.msra.mxu0 %v249
        %859 = vmatprep.subr.mxu0 0.0
        %860 = vmatpush1.msra.mxu0 %v250
        %861 = vmatprep.subr.mxu0 0.0
        %862 = vmatpush1.msra.mxu0 %v251
        %863 = vmatprep.subr.mxu0 0.0
        %864 = vmatpush1.msra.mxu0 %v252
        %865 = vmatprep.subr.mxu0 0.0
        %866 = vmatpush1.msra.mxu0 %v253
        %867 = vmatprep.subr.mxu0 0.0
        %868 = vmatpush1.msra.mxu0 %v254
        %869 = vmatprep.subr.mxu0 0.0
        %870 = vmatpush1.msra.mxu0 %v255
        %871 = vmatprep.subr.mxu0 0.0
        %872 = vmatpush1.msra.mxu0 %v256
        %873 = vmatprep.subr.mxu0 0.0
        %874 = vmatpush1.msra.mxu0 %v257
        %875 = vmatprep.subr.mxu0 0.0
        %876 = vmatpush1.msra.mxu0 %v258
        %877 = vmatprep.subr.mxu0 0.0
        %878 = vmatpush1.msra.mxu0 %v259
        %879 = vmatprep.subr.mxu0 0.0
        %880 = vmatpush1.msra.mxu0 %v260
        %881 = vmatprep.subr.mxu0 0.0
        %882 = vmatpush1.msra.mxu0 %v261
        %883 = vmatprep.subr.mxu0 0.0
        %884 = vmatpush1.msra.mxu0 %v262
        %885 = vmatprep.subr.mxu0 0.0
        %886 = vmatpush1.msra.mxu0 %v263
        %887 = vmatprep.subr.mxu0 0.0
        %888 = vmatpush1.msra.mxu0 %v264
        %889 = vmatprep.subr.mxu0 0.0
        %890 = vmatpush1.msra.mxu0 %v265
        %891 = vmatprep.subr.mxu0 0.0
        %892 = vmatpush1.msra.mxu0 %v266
        %893 = vmatprep.subr.mxu0 0.0
        %894 = vmatpush1.msra.mxu0 %v267
        %895 = vmatprep.subr.mxu0 0.0
        %896 = vmatpush1.msra.mxu0 %v268
        %897 = vmatprep.subr.mxu0 0.0
        %898 = vmatpush1.msra.mxu0 %v269
        %899 = vmatprep.subr.mxu0 0.0
        %900 = vmatpush1.msra.mxu0 %v270
        %901 = vmatprep.subr.mxu0 0.0
        %902 = vmatpush1.msra.mxu0 %v271
        %903 = vmatprep.subr.mxu0 0.0
        %904 = vmatpush1.msra.mxu0 %v272
        %905 = vmatprep.subr.mxu0 0.0
        %906 = vmatpush1.msra.mxu0 %v273
        %907 = vmatprep.subr.mxu0 0.0
        %908 = vmatpush1.msra.mxu0 %v274
        %909 = vmatprep.mubr.f32.mxu0 %v206
        %910 = vmatmul.mubr.f32.gmra.mrb[0].mxu0 %v205
        %v911 = vpop.f32.mrb[0].mxu0
        %v912 = vadd.f32 %v842, %v911
        %v913 = vpop.f32.mrb[0].mxu0
        %914 = vdwg.mxu0
        %915 = vmatprep.subr.mxu0 0.0
        %916 = vmatpush1.msra.mxu0 %v275
        %917 = vmatprep.subr.mxu0 0.0
        %918 = vmatpush1.msra.mxu0 %v276
        %919 = vmatprep.subr.mxu0 0.0
        %920 = vmatpush1.msra.mxu0 %v277
        %921 = vmatprep.subr.mxu0 0.0
        %922 = vmatpush1.msra.mxu0 %v278
        %923 = vmatprep.subr.mxu0 0.0
        %924 = vmatpush1.msra.mxu0 %v279
        %925 = vmatprep.subr.mxu0 0.0
        %926 = vmatpush1.msra.mxu0 %v280
        %927 = vmatprep.subr.mxu0 0.0
        %928 = vmatpush1.msra.mxu0 %v281
        %929 = vmatprep.subr.mxu0 0.0
        %930 = vmatpush1.msra.mxu0 %v282
        %931 = vmatprep.subr.mxu0 0.0
        %932 = vmatpush1.msra.mxu0 %v283
        %933 = vmatprep.subr.mxu0 0.0
        %934 = vmatpush1.msra.mxu0 %v284
        %935 = vmatprep.subr.mxu0 0.0
        %936 = vmatpush1.msra.mxu0 %v285
        %937 = vmatprep.subr.mxu0 0.0
        %938 = vmatpush1.msra.mxu0 %v286
        %939 = vmatprep.subr.mxu0 0.0
        %940 = vmatpush1.msra.mxu0 %v287
        %941 = vmatprep.subr.mxu0 0.0
        %942 = vmatpush1.msra.mxu0 %v288
        %943 = vmatprep.subr.mxu0 0.0
        %944 = vmatpush1.msra.mxu0 %v289
        %945 = vmatprep.subr.mxu0 0.0
        %946 = vmatpush1.msra.mxu0 %v290
        %947 = vmatprep.subr.mxu0 0.0
        %948 = vmatpush1.msra.mxu0 %v291
        %949 = vmatprep.subr.mxu0 0.0
        %950 = vmatpush1.msra.mxu0 %v292
        %951 = vmatprep.subr.mxu0 0.0
        %952 = vmatpush1.msra.mxu0 %v293
        %953 = vmatprep.subr.mxu0 0.0
        %954 = vmatpush1.msra.mxu0 %v294
        %955 = vmatprep.subr.mxu0 0.0
        %956 = vmatpush1.msra.mxu0 %v295
        %957 = vmatprep.subr.mxu0 0.0
        %958 = vmatpush1.msra.mxu0 %v296
        %959 = vmatprep.subr.mxu0 0.0
        %960 = vmatpush1.msra.mxu0 %v297
        %961 = vmatprep.subr.mxu0 0.0
        %962 = vmatpush1.msra.mxu0 %v298
        %963 = vmatprep.subr.mxu0 0.0
        %964 = vmatpush1.msra.mxu0 %v299
        %965 = vmatprep.subr.mxu0 0.0
        %966 = vmatpush1.msra.mxu0 %v300
        %967 = vmatprep.subr.mxu0 0.0
        %968 = vmatpush1.msra.mxu0 %v301
        %969 = vmatprep.subr.mxu0 0.0
        %970 = vmatpush1.msra.mxu0 %v302
        %971 = vmatprep.subr.mxu0 0.0
        %972 = vmatpush1.msra.mxu0 %v303
        %973 = vmatprep.subr.mxu0 0.0
        %974 = vmatpush1.msra.mxu0 %v304
        %975 = vmatprep.subr.mxu0 0.0
        %976 = vmatpush1.msra.mxu0 %v305
        %977 = vmatprep.subr.mxu0 0.0
        %978 = vmatpush1.msra.mxu0 %v306
        %979 = vmatprep.mubr.f32.mxu0 %v208
        %980 = vmatmul.mubr.f32.gmra.mrb[0].mxu0 %v207
        %v981 = vpop.f32.mrb[0].mxu0
        %v982 = vadd.f32 %v912, %v981
        %v983 = vpop.f32.mrb[0].mxu0
        %984 = vdwg.mxu0
        %985 = vmatprep.subr.mxu0 0.0
        %986 = vmatpush1.msra.mxu0 %v307
        %987 = vmatprep.subr.mxu0 0.0
        %988 = vmatpush1.msra.mxu0 %v308
        %989 = vmatprep.subr.mxu0 0.0
        %990 = vmatpush1.msra.mxu0 %v309
        %991 = vmatprep.subr.mxu0 0.0
        %992 = vmatpush1.msra.mxu0 %v310
        %993 = vmatprep.subr.mxu0 0.0
        %994 = vmatpush1.msra.mxu0 %v311
        %995 = vmatprep.subr.mxu0 0.0
        %996 = vmatpush1.msra.mxu0 %v312
        %997 = vmatprep.subr.mxu0 0.0
        %998 = vmatpush1.msra.mxu0 %v313
        %999 = vmatprep.subr.mxu0 0.0
        %1000 = vmatpush1.msra.mxu0 %v314
        %1001 = vmatprep.subr.mxu0 0.0
        %1002 = vmatpush1.msra.mxu0 %v315
        %1003 = vmatprep.subr.mxu0 0.0
        %1004 = vmatpush1.msra.mxu0 %v316
        %1005 = vmatprep.subr.mxu0 0.0
        %1006 = vmatpush1.msra.mxu0 %v317
        %1007 = vmatprep.subr.mxu0 0.0
        %1008 = vmatpush1.msra.mxu0 %v318
        %1009 = vmatprep.subr.mxu0 0.0
        %1010 = vmatpush1.msra.mxu0 %v319
        %1011 = vmatprep.subr.mxu0 0.0
        %1012 = vmatpush1.msra.mxu0 %v320
        %1013 = vmatprep.subr.mxu0 0.0
        %1014 = vmatpush1.msra.mxu0 %v321
        %1015 = vmatprep.subr.mxu0 0.0
        %1016 = vmatpush1.msra.mxu0 %v322
        %1017 = vmatprep.subr.mxu0 0.0
        %1018 = vmatpush1.msra.mxu0 %v323
        %1019 = vmatprep.subr.mxu0 0.0
        %1020 = vmatpush1.msra.mxu0 %v324
        %1021 = vmatprep.subr.mxu0 0.0
        %1022 = vmatpush1.msra.mxu0 %v325
        %1023 = vmatprep.subr.mxu0 0.0
        %1024 = vmatpush1.msra.mxu0 %v326
        %1025 = vmatprep.subr.mxu0 0.0
        %1026 = vmatpush1.msra.mxu0 %v327
        %1027 = vmatprep.subr.mxu0 0.0
        %1028 = vmatpush1.msra.mxu0 %v328
        %1029 = vmatprep.subr.mxu0 0.0
        %1030 = vmatpush1.msra.mxu0 %v329
        %1031 = vmatprep.subr.mxu0 0.0
        %1032 = vmatpush1.msra.mxu0 %v330
        %1033 = vmatprep.subr.mxu0 0.0
        %1034 = vmatpush1.msra.mxu0 %v331
        %1035 = vmatprep.subr.mxu0 0.0
        %1036 = vmatpush1.msra.mxu0 %v332
        %1037 = vmatprep.subr.mxu0 0.0
        %1038 = vmatpush1.msra.mxu0 %v333
        %1039 = vmatprep.subr.mxu0 0.0
        %1040 = vmatpush1.msra.mxu0 %v334
        %1041 = vmatprep.subr.mxu0 0.0
        %1042 = vmatpush1.msra.mxu0 %v335
        %1043 = vmatprep.subr.mxu0 0.0
        %1044 = vmatpush1.msra.mxu0 %v336
        %1045 = vmatprep.subr.mxu0 0.0
        %1046 = vmatpush1.msra.mxu0 %v337
        %1047 = vmatprep.subr.mxu0 0.0
        %1048 = vmatpush1.msra.mxu0 %v338
        %1049 = vmatprep.mubr.f32.mxu0 %v210
        %1050 = vmatmul.mubr.f32.gmra.mrb[0].mxu0 %v209
        %v1051 = vpop.f32.mrb[0].mxu0
        %v1052 = vadd.f32 %v982, %v1051
        %v1053 = vpop.f32.mrb[0].mxu0
        %1054 = vdwg.mxu0
        %1055 = vset.pattern.permute.xlu0 2
        %1056 = vperm.xlu0 %1055, %v183
        %v1057 = vpop.permute.xlu0 %1056
        %vm1058 = vcmp.eq.s32.totalorder %v1057, %v175
        %vm1059 = vcmp.eq.s32.totalorder %v1057, %v176
        %vm1060 = vcmp.eq.s32.totalorder %v1057, %v177
        %vm1061 = vcmp.eq.s32.totalorder %v1057, %v178
        %vm1062 = vcmp.eq.s32.totalorder %v1057, %v179
        %vm1063 = vcmp.eq.s32.totalorder %v1057, %v180
        %vm1064 = vcmp.eq.s32.totalorder %v1057, %v181
        %vm1065 = vcmp.eq.s32.totalorder %v1057, %v182
        %v1066 = vsel %vm1058, 1, 0
        %v1067 = vsel %vm1059, 1, 0
        %v1068 = vsel %vm1060, 1, 0
        %v1069 = vsel %vm1061, 1, 0
        %v1070 = vsel %vm1062, 1, 0
        %v1071 = vsel %vm1063, 1, 0
        %v1072 = vsel %vm1064, 1, 0
        %v1073 = vsel %vm1065, 1, 0
        %v1074 = vcvt.s32.f32 %v1066
        %v1075 = vcvt.s32.f32 %v1067
        %v1076 = vcvt.s32.f32 %v1068
        %v1077 = vcvt.s32.f32 %v1069
        %v1078 = vcvt.s32.f32 %v1070
        %v1079 = vcvt.s32.f32 %v1071
        %v1080 = vcvt.s32.f32 %v1072
        %v1081 = vcvt.s32.f32 %v1073
        %s1082 = scalar_lea.vmem [#allocation5], 2048
        %v1083 = vld [vmem:[%s1082] sm:$0xff]
        %v1084 = vld [vmem:[%s1082 + $0x8] sm:$0xff]
        %v1085 = vld [vmem:[%s1082 + $0x10] sm:$0xff]
        %v1086 = vld [vmem:[%s1082 + $0x18] sm:$0xff]
        %v1087 = vld [vmem:[%s1082 + $0x20] sm:$0xff]
        %v1088 = vld [vmem:[%s1082 + $0x28] sm:$0xff]
        %v1089 = vld [vmem:[%s1082 + $0x30] sm:$0xff]
        %v1090 = vld [vmem:[%s1082 + $0x38] sm:$0xff]
        %v1091 = vld [vmem:[%s1082 + $0x40] sm:$0xff]
        %v1092 = vld [vmem:[%s1082 + $0x48] sm:$0xff]
        %v1093 = vld [vmem:[%s1082 + $0x50] sm:$0xff]
        %v1094 = vld [vmem:[%s1082 + $0x58] sm:$0xff]
        %v1095 = vld [vmem:[%s1082 + $0x60] sm:$0xff]
        %v1096 = vld [vmem:[%s1082 + $0x68] sm:$0xff]
        %v1097 = vld [vmem:[%s1082 + $0x70] sm:$0xff]
        %v1098 = vld [vmem:[%s1082 + $0x78] sm:$0xff]
        %v1099 = vld [vmem:[%s1082 + $0x80] sm:$0xff]
        %v1100 = vld [vmem:[%s1082 + $0x88] sm:$0xff]
        %v1101 = vld [vmem:[%s1082 + $0x90] sm:$0xff]
        %v1102 = vld [vmem:[%s1082 + $0x98] sm:$0xff]
        %v1103 = vld [vmem:[%s1082 + $0xa0] sm:$0xff]
        %v1104 = vld [vmem:[%s1082 + $0xa8] sm:$0xff]
        %v1105 = vld [vmem:[%s1082 + $0xb0] sm:$0xff]
        %v1106 = vld [vmem:[%s1082 + $0xb8] sm:$0xff]
        %v1107 = vld [vmem:[%s1082 + $0xc0] sm:$0xff]
        %v1108 = vld [vmem:[%s1082 + $0xc8] sm:$0xff]
        %v1109 = vld [vmem:[%s1082 + $0xd0] sm:$0xff]
        %v1110 = vld [vmem:[%s1082 + $0xd8] sm:$0xff]
        %v1111 = vld [vmem:[%s1082 + $0xe0] sm:$0xff]
        %v1112 = vld [vmem:[%s1082 + $0xe8] sm:$0xff]
        %v1113 = vld [vmem:[%s1082 + $0xf0] sm:$0xff]
        %v1114 = vld [vmem:[%s1082 + $0xf8] sm:$0xff]
        %v1115 = vld [vmem:[%s1082 + $0x100] sm:$0xff]
        %v1116 = vld [vmem:[%s1082 + $0x108] sm:$0xff]
        %v1117 = vld [vmem:[%s1082 + $0x110] sm:$0xff]
        %v1118 = vld [vmem:[%s1082 + $0x118] sm:$0xff]
        %v1119 = vld [vmem:[%s1082 + $0x120] sm:$0xff]
        %v1120 = vld [vmem:[%s1082 + $0x128] sm:$0xff]
        %v1121 = vld [vmem:[%s1082 + $0x130] sm:$0xff]
        %v1122 = vld [vmem:[%s1082 + $0x138] sm:$0xff]
        %v1123 = vld [vmem:[%s1082 + $0x140] sm:$0xff]
        %v1124 = vld [vmem:[%s1082 + $0x148] sm:$0xff]
        %v1125 = vld [vmem:[%s1082 + $0x150] sm:$0xff]
        %v1126 = vld [vmem:[%s1082 + $0x158] sm:$0xff]
        %v1127 = vld [vmem:[%s1082 + $0x160] sm:$0xff]
        %v1128 = vld [vmem:[%s1082 + $0x168] sm:$0xff]
        %v1129 = vld [vmem:[%s1082 + $0x170] sm:$0xff]
        %v1130 = vld [vmem:[%s1082 + $0x178] sm:$0xff]
        %v1131 = vld [vmem:[%s1082 + $0x180] sm:$0xff]
        %v1132 = vld [vmem:[%s1082 + $0x188] sm:$0xff]
        %v1133 = vld [vmem:[%s1082 + $0x190] sm:$0xff]
        %v1134 = vld [vmem:[%s1082 + $0x198] sm:$0xff]
        %v1135 = vld [vmem:[%s1082 + $0x1a0] sm:$0xff]
        %v1136 = vld [vmem:[%s1082 + $0x1a8] sm:$0xff]
        %v1137 = vld [vmem:[%s1082 + $0x1b0] sm:$0xff]
        %v1138 = vld [vmem:[%s1082 + $0x1b8] sm:$0xff]
        %v1139 = vld [vmem:[%s1082 + $0x1c0] sm:$0xff]
        %v1140 = vld [vmem:[%s1082 + $0x1c8] sm:$0xff]
        %v1141 = vld [vmem:[%s1082 + $0x1d0] sm:$0xff]
        %v1142 = vld [vmem:[%s1082 + $0x1d8] sm:$0xff]
        %v1143 = vld [vmem:[%s1082 + $0x1e0] sm:$0xff]
        %v1144 = vld [vmem:[%s1082 + $0x1e8] sm:$0xff]
        %v1145 = vld [vmem:[%s1082 + $0x1f0] sm:$0xff]
        %v1146 = vld [vmem:[%s1082 + $0x1f8] sm:$0xff]
        %v1147 = vld [vmem:[%s1082 + $0x200] sm:$0xff]
        %v1148 = vld [vmem:[%s1082 + $0x208] sm:$0xff]
        %v1149 = vld [vmem:[%s1082 + $0x210] sm:$0xff]
        %v1150 = vld [vmem:[%s1082 + $0x218] sm:$0xff]
        %v1151 = vld [vmem:[%s1082 + $0x220] sm:$0xff]
        %v1152 = vld [vmem:[%s1082 + $0x228] sm:$0xff]
        %v1153 = vld [vmem:[%s1082 + $0x230] sm:$0xff]
        %v1154 = vld [vmem:[%s1082 + $0x238] sm:$0xff]
        %v1155 = vld [vmem:[%s1082 + $0x240] sm:$0xff]
        %v1156 = vld [vmem:[%s1082 + $0x248] sm:$0xff]
        %v1157 = vld [vmem:[%s1082 + $0x250] sm:$0xff]
        %v1158 = vld [vmem:[%s1082 + $0x258] sm:$0xff]
        %v1159 = vld [vmem:[%s1082 + $0x260] sm:$0xff]
        %v1160 = vld [vmem:[%s1082 + $0x268] sm:$0xff]
        %v1161 = vld [vmem:[%s1082 + $0x270] sm:$0xff]
        %v1162 = vld [vmem:[%s1082 + $0x278] sm:$0xff]
        %v1163 = vld [vmem:[%s1082 + $0x280] sm:$0xff]
        %v1164 = vld [vmem:[%s1082 + $0x288] sm:$0xff]
        %v1165 = vld [vmem:[%s1082 + $0x290] sm:$0xff]
        %v1166 = vld [vmem:[%s1082 + $0x298] sm:$0xff]
        %v1167 = vld [vmem:[%s1082 + $0x2a0] sm:$0xff]
        %v1168 = vld [vmem:[%s1082 + $0x2a8] sm:$0xff]
        %v1169 = vld [vmem:[%s1082 + $0x2b0] sm:$0xff]
        %v1170 = vld [vmem:[%s1082 + $0x2b8] sm:$0xff]
        %v1171 = vld [vmem:[%s1082 + $0x2c0] sm:$0xff]
        %v1172 = vld [vmem:[%s1082 + $0x2c8] sm:$0xff]
        %v1173 = vld [vmem:[%s1082 + $0x2d0] sm:$0xff]
        %v1174 = vld [vmem:[%s1082 + $0x2d8] sm:$0xff]
        %v1175 = vld [vmem:[%s1082 + $0x2e0] sm:$0xff]
        %v1176 = vld [vmem:[%s1082 + $0x2e8] sm:$0xff]
        %v1177 = vld [vmem:[%s1082 + $0x2f0] sm:$0xff]
        %v1178 = vld [vmem:[%s1082 + $0x2f8] sm:$0xff]
        %v1179 = vld [vmem:[%s1082 + $0x300] sm:$0xff]
        %v1180 = vld [vmem:[%s1082 + $0x308] sm:$0xff]
        %v1181 = vld [vmem:[%s1082 + $0x310] sm:$0xff]
        %v1182 = vld [vmem:[%s1082 + $0x318] sm:$0xff]
        %v1183 = vld [vmem:[%s1082 + $0x320] sm:$0xff]
        %v1184 = vld [vmem:[%s1082 + $0x328] sm:$0xff]
        %v1185 = vld [vmem:[%s1082 + $0x330] sm:$0xff]
        %v1186 = vld [vmem:[%s1082 + $0x338] sm:$0xff]
        %v1187 = vld [vmem:[%s1082 + $0x340] sm:$0xff]
        %v1188 = vld [vmem:[%s1082 + $0x348] sm:$0xff]
        %v1189 = vld [vmem:[%s1082 + $0x350] sm:$0xff]
        %v1190 = vld [vmem:[%s1082 + $0x358] sm:$0xff]
        %v1191 = vld [vmem:[%s1082 + $0x360] sm:$0xff]
        %v1192 = vld [vmem:[%s1082 + $0x368] sm:$0xff]
        %v1193 = vld [vmem:[%s1082 + $0x370] sm:$0xff]
        %v1194 = vld [vmem:[%s1082 + $0x378] sm:$0xff]
        %v1195 = vld [vmem:[%s1082 + $0x380] sm:$0xff]
        %v1196 = vld [vmem:[%s1082 + $0x388] sm:$0xff]
        %v1197 = vld [vmem:[%s1082 + $0x390] sm:$0xff]
        %v1198 = vld [vmem:[%s1082 + $0x398] sm:$0xff]
        %v1199 = vld [vmem:[%s1082 + $0x3a0] sm:$0xff]
        %v1200 = vld [vmem:[%s1082 + $0x3a8] sm:$0xff]
        %v1201 = vld [vmem:[%s1082 + $0x3b0] sm:$0xff]
        %v1202 = vld [vmem:[%s1082 + $0x3b8] sm:$0xff]
        %v1203 = vld [vmem:[%s1082 + $0x3c0] sm:$0xff]
        %v1204 = vld [vmem:[%s1082 + $0x3c8] sm:$0xff]
        %v1205 = vld [vmem:[%s1082 + $0x3d0] sm:$0xff]
        %v1206 = vld [vmem:[%s1082 + $0x3d8] sm:$0xff]
        %v1207 = vld [vmem:[%s1082 + $0x3e0] sm:$0xff]
        %v1208 = vld [vmem:[%s1082 + $0x3e8] sm:$0xff]
        %v1209 = vld [vmem:[%s1082 + $0x3f0] sm:$0xff]
        %v1210 = vld [vmem:[%s1082 + $0x3f8] sm:$0xff]
        %1211 = vmatprep.subr.mxu0 0.0
        %1212 = vmatpush1.msra.mxu0 %v1083
        %1213 = vmatprep.subr.mxu0 0.0
        %1214 = vmatpush1.msra.mxu0 %v1084
        %1215 = vmatprep.subr.mxu0 0.0
        %1216 = vmatpush1.msra.mxu0 %v1085
        %1217 = vmatprep.subr.mxu0 0.0
        %1218 = vmatpush1.msra.mxu0 %v1086
        %1219 = vmatprep.subr.mxu0 0.0
        %1220 = vmatpush1.msra.mxu0 %v1087
        %1221 = vmatprep.subr.mxu0 0.0
        %1222 = vmatpush1.msra.mxu0 %v1088
        %1223 = vmatprep.subr.mxu0 0.0
        %1224 = vmatpush1.msra.mxu0 %v1089
        %1225 = vmatprep.subr.mxu0 0.0
        %1226 = vmatpush1.msra.mxu0 %v1090
        %1227 = vmatprep.subr.mxu0 0.0
        %1228 = vmatpush1.msra.mxu0 %v1091
        %1229 = vmatprep.subr.mxu0 0.0
        %1230 = vmatpush1.msra.mxu0 %v1092
        %1231 = vmatprep.subr.mxu0 0.0
        %1232 = vmatpush1.msra.mxu0 %v1093
        %1233 = vmatprep.subr.mxu0 0.0
        %1234 = vmatpush1.msra.mxu0 %v1094
        %1235 = vmatprep.subr.mxu0 0.0
        %1236 = vmatpush1.msra.mxu0 %v1095
        %1237 = vmatprep.subr.mxu0 0.0
        %1238 = vmatpush1.msra.mxu0 %v1096
        %1239 = vmatprep.subr.mxu0 0.0
        %1240 = vmatpush1.msra.mxu0 %v1097
        %1241 = vmatprep.subr.mxu0 0.0
        %1242 = vmatpush1.msra.mxu0 %v1098
        %1243 = vmatprep.subr.mxu0 0.0
        %1244 = vmatpush1.msra.mxu0 %v1099
        %1245 = vmatprep.subr.mxu0 0.0
        %1246 = vmatpush1.msra.mxu0 %v1100
        %1247 = vmatprep.subr.mxu0 0.0
        %1248 = vmatpush1.msra.mxu0 %v1101
        %1249 = vmatprep.subr.mxu0 0.0
        %1250 = vmatpush1.msra.mxu0 %v1102
        %1251 = vmatprep.subr.mxu0 0.0
        %1252 = vmatpush1.msra.mxu0 %v1103
        %1253 = vmatprep.subr.mxu0 0.0
        %1254 = vmatpush1.msra.mxu0 %v1104
        %1255 = vmatprep.subr.mxu0 0.0
        %1256 = vmatpush1.msra.mxu0 %v1105
        %1257 = vmatprep.subr.mxu0 0.0
        %1258 = vmatpush1.msra.mxu0 %v1106
        %1259 = vmatprep.subr.mxu0 0.0
        %1260 = vmatpush1.msra.mxu0 %v1107
        %1261 = vmatprep.subr.mxu0 0.0
        %1262 = vmatpush1.msra.mxu0 %v1108
        %1263 = vmatprep.subr.mxu0 0.0
        %1264 = vmatpush1.msra.mxu0 %v1109
        %1265 = vmatprep.subr.mxu0 0.0
        %1266 = vmatpush1.msra.mxu0 %v1110
        %1267 = vmatprep.subr.mxu0 0.0
        %1268 = vmatpush1.msra.mxu0 %v1111
        %1269 = vmatprep.subr.mxu0 0.0
        %1270 = vmatpush1.msra.mxu0 %v1112
        %1271 = vmatprep.subr.mxu0 0.0
        %1272 = vmatpush1.msra.mxu0 %v1113
        %1273 = vmatprep.subr.mxu0 0.0
        %1274 = vmatpush1.msra.mxu0 %v1114
        %1275 = vmatprep.mubr.f32.mxu0 %v1075
        %1276 = vmatmul.mubr.f32.gmra.mrb[0].mxu0 %v1074
        %v1277 = vpop.f32.mrb[0].mxu0
        %v1278 = vadd.f32 0.0, %v1277
        %v1279 = vpop.f32.mrb[0].mxu0
        %1280 = vdwg.mxu0
        %1281 = vmatprep.subr.mxu0 0.0
        %1282 = vmatpush1.msra.mxu0 %v1115
        %1283 = vmatprep.subr.mxu0 0.0
        %1284 = vmatpush1.msra.mxu0 %v1116
        %1285 = vmatprep.subr.mxu0 0.0
        %1286 = vmatpush1.msra.mxu0 %v1117
        %1287 = vmatprep.subr.mxu0 0.0
        %1288 = vmatpush1.msra.mxu0 %v1118
        %1289 = vmatprep.subr.mxu0 0.0
        %1290 = vmatpush1.msra.mxu0 %v1119
        %1291 = vmatprep.subr.mxu0 0.0
        %1292 = vmatpush1.msra.mxu0 %v1120
        %1293 = vmatprep.subr.mxu0 0.0
        %1294 = vmatpush1.msra.mxu0 %v1121
        %1295 = vmatprep.subr.mxu0 0.0
        %1296 = vmatpush1.msra.mxu0 %v1122
        %1297 = vmatprep.subr.mxu0 0.0
        %1298 = vmatpush1.msra.mxu0 %v1123
        %1299 = vmatprep.subr.mxu0 0.0
        %1300 = vmatpush1.msra.mxu0 %v1124
        %1301 = vmatprep.subr.mxu0 0.0
        %1302 = vmatpush1.msra.mxu0 %v1125
        %1303 = vmatprep.subr.mxu0 0.0
        %1304 = vmatpush1.msra.mxu0 %v1126
        %1305 = vmatprep.subr.mxu0 0.0
        %1306 = vmatpush1.msra.mxu0 %v1127
        %1307 = vmatprep.subr.mxu0 0.0
        %1308 = vmatpush1.msra.mxu0 %v1128
        %1309 = vmatprep.subr.mxu0 0.0
        %1310 = vmatpush1.msra.mxu0 %v1129
        %1311 = vmatprep.subr.mxu0 0.0
        %1312 = vmatpush1.msra.mxu0 %v1130
        %1313 = vmatprep.subr.mxu0 0.0
        %1314 = vmatpush1.msra.mxu0 %v1131
        %1315 = vmatprep.subr.mxu0 0.0
        %1316 = vmatpush1.msra.mxu0 %v1132
        %1317 = vmatprep.subr.mxu0 0.0
        %1318 = vmatpush1.msra.mxu0 %v1133
        %1319 = vmatprep.subr.mxu0 0.0
        %1320 = vmatpush1.msra.mxu0 %v1134
        %1321 = vmatprep.subr.mxu0 0.0
        %1322 = vmatpush1.msra.mxu0 %v1135
        %1323 = vmatprep.subr.mxu0 0.0
        %1324 = vmatpush1.msra.mxu0 %v1136
        %1325 = vmatprep.subr.mxu0 0.0
        %1326 = vmatpush1.msra.mxu0 %v1137
        %1327 = vmatprep.subr.mxu0 0.0
        %1328 = vmatpush1.msra.mxu0 %v1138
        %1329 = vmatprep.subr.mxu0 0.0
        %1330 = vmatpush1.msra.mxu0 %v1139
        %1331 = vmatprep.subr.mxu0 0.0
        %1332 = vmatpush1.msra.mxu0 %v1140
        %1333 = vmatprep.subr.mxu0 0.0
        %1334 = vmatpush1.msra.mxu0 %v1141
        %1335 = vmatprep.subr.mxu0 0.0
        %1336 = vmatpush1.msra.mxu0 %v1142
        %1337 = vmatprep.subr.mxu0 0.0
        %1338 = vmatpush1.msra.mxu0 %v1143
        %1339 = vmatprep.subr.mxu0 0.0
        %1340 = vmatpush1.msra.mxu0 %v1144
        %1341 = vmatprep.subr.mxu0 0.0
        %1342 = vmatpush1.msra.mxu0 %v1145
        %1343 = vmatprep.subr.mxu0 0.0
        %1344 = vmatpush1.msra.mxu0 %v1146
        %1345 = vmatprep.mubr.f32.mxu0 %v1077
        %1346 = vmatmul.mubr.f32.gmra.mrb[0].mxu0 %v1076
        %v1347 = vpop.f32.mrb[0].mxu0
        %v1348 = vadd.f32 %v1278, %v1347
        %v1349 = vpop.f32.mrb[0].mxu0
        %1350 = vdwg.mxu0
        %1351 = vmatprep.subr.mxu0 0.0
        %1352 = vmatpush1.msra.mxu0 %v1147
        %1353 = vmatprep.subr.mxu0 0.0
        %1354 = vmatpush1.msra.mxu0 %v1148
        %1355 = vmatprep.subr.mxu0 0.0
        %1356 = vmatpush1.msra.mxu0 %v1149
        %1357 = vmatprep.subr.mxu0 0.0
        %1358 = vmatpush1.msra.mxu0 %v1150
        %1359 = vmatprep.subr.mxu0 0.0
        %1360 = vmatpush1.msra.mxu0 %v1151
        %1361 = vmatprep.subr.mxu0 0.0
        %1362 = vmatpush1.msra.mxu0 %v1152
        %1363 = vmatprep.subr.mxu0 0.0
        %1364 = vmatpush1.msra.mxu0 %v1153
        %1365 = vmatprep.subr.mxu0 0.0
        %1366 = vmatpush1.msra.mxu0 %v1154
        %1367 = vmatprep.subr.mxu0 0.0
        %1368 = vmatpush1.msra.mxu0 %v1155
        %1369 = vmatprep.subr.mxu0 0.0
        %1370 = vmatpush1.msra.mxu0 %v1156
        %1371 = vmatprep.subr.mxu0 0.0
        %1372 = vmatpush1.msra.mxu0 %v1157
        %1373 = vmatprep.subr.mxu0 0.0
        %1374 = vmatpush1.msra.mxu0 %v1158
        %1375 = vmatprep.subr.mxu0 0.0
        %1376 = vmatpush1.msra.mxu0 %v1159
        %1377 = vmatprep.subr.mxu0 0.0
        %1378 = vmatpush1.msra.mxu0 %v1160
        %1379 = vmatprep.subr.mxu0 0.0
        %1380 = vmatpush1.msra.mxu0 %v1161
        %1381 = vmatprep.subr.mxu0 0.0
        %1382 = vmatpush1.msra.mxu0 %v1162
        %1383 = vmatprep.subr.mxu0 0.0
        %1384 = vmatpush1.msra.mxu0 %v1163
        %1385 = vmatprep.subr.mxu0 0.0
        %1386 = vmatpush1.msra.mxu0 %v1164
        %1387 = vmatprep.subr.mxu0 0.0
        %1388 = vmatpush1.msra.mxu0 %v1165
        %1389 = vmatprep.subr.mxu0 0.0
        %1390 = vmatpush1.msra.mxu0 %v1166
        %1391 = vmatprep.subr.mxu0 0.0
        %1392 = vmatpush1.msra.mxu0 %v1167
        %1393 = vmatprep.subr.mxu0 0.0
        %1394 = vmatpush1.msra.mxu0 %v1168
        %1395 = vmatprep.subr.mxu0 0.0
        %1396 = vmatpush1.msra.mxu0 %v1169
        %1397 = vmatprep.subr.mxu0 0.0
        %1398 = vmatpush1.msra.mxu0 %v1170
        %1399 = vmatprep.subr.mxu0 0.0
        %1400 = vmatpush1.msra.mxu0 %v1171
        %1401 = vmatprep.subr.mxu0 0.0
        %1402 = vmatpush1.msra.mxu0 %v1172
        %1403 = vmatprep.subr.mxu0 0.0
        %1404 = vmatpush1.msra.mxu0 %v1173
        %1405 = vmatprep.subr.mxu0 0.0
        %1406 = vmatpush1.msra.mxu0 %v1174
        %1407 = vmatprep.subr.mxu0 0.0
        %1408 = vmatpush1.msra.mxu0 %v1175
        %1409 = vmatprep.subr.mxu0 0.0
        %1410 = vmatpush1.msra.mxu0 %v1176
        %1411 = vmatprep.subr.mxu0 0.0
        %1412 = vmatpush1.msra.mxu0 %v1177
        %1413 = vmatprep.subr.mxu0 0.0
        %1414 = vmatpush1.msra.mxu0 %v1178
        %1415 = vmatprep.mubr.f32.mxu0 %v1079
        %1416 = vmatmul.mubr.f32.gmra.mrb[0].mxu0 %v1078
        %v1417 = vpop.f32.mrb[0].mxu0
        %v1418 = vadd.f32 %v1348, %v1417
        %v1419 = vpop.f32.mrb[0].mxu0
        %1420 = vdwg.mxu0
        %1421 = vmatprep.subr.mxu0 0.0
        %1422 = vmatpush1.msra.mxu0 %v1179
        %1423 = vmatprep.subr.mxu0 0.0
        %1424 = vmatpush1.msra.mxu0 %v1180
        %1425 = vmatprep.subr.mxu0 0.0
        %1426 = vmatpush1.msra.mxu0 %v1181
        %1427 = vmatprep.subr.mxu0 0.0
        %1428 = vmatpush1.msra.mxu0 %v1182
        %1429 = vmatprep.subr.mxu0 0.0
        %1430 = vmatpush1.msra.mxu0 %v1183
        %1431 = vmatprep.subr.mxu0 0.0
        %1432 = vmatpush1.msra.mxu0 %v1184
        %1433 = vmatprep.subr.mxu0 0.0
        %1434 = vmatpush1.msra.mxu0 %v1185
        %1435 = vmatprep.subr.mxu0 0.0
        %1436 = vmatpush1.msra.mxu0 %v1186
        %1437 = vmatprep.subr.mxu0 0.0
        %1438 = vmatpush1.msra.mxu0 %v1187
        %1439 = vmatprep.subr.mxu0 0.0
        %1440 = vmatpush1.msra.mxu0 %v1188
        %1441 = vmatprep.subr.mxu0 0.0
        %1442 = vmatpush1.msra.mxu0 %v1189
        %1443 = vmatprep.subr.mxu0 0.0
        %1444 = vmatpush1.msra.mxu0 %v1190
        %1445 = vmatprep.subr.mxu0 0.0
        %1446 = vmatpush1.msra.mxu0 %v1191
        %1447 = vmatprep.subr.mxu0 0.0
        %1448 = vmatpush1.msra.mxu0 %v1192
        %1449 = vmatprep.subr.mxu0 0.0
        %1450 = vmatpush1.msra.mxu0 %v1193
        %1451 = vmatprep.subr.mxu0 0.0
        %1452 = vmatpush1.msra.mxu0 %v1194
        %1453 = vmatprep.subr.mxu0 0.0
        %1454 = vmatpush1.msra.mxu0 %v1195
        %1455 = vmatprep.subr.mxu0 0.0
        %1456 = vmatpush1.msra.mxu0 %v1196
        %1457 = vmatprep.subr.mxu0 0.0
        %1458 = vmatpush1.msra.mxu0 %v1197
        %1459 = vmatprep.subr.mxu0 0.0
        %1460 = vmatpush1.msra.mxu0 %v1198
        %1461 = vmatprep.subr.mxu0 0.0
        %1462 = vmatpush1.msra.mxu0 %v1199
        %1463 = vmatprep.subr.mxu0 0.0
        %1464 = vmatpush1.msra.mxu0 %v1200
        %1465 = vmatprep.subr.mxu0 0.0
        %1466 = vmatpush1.msra.mxu0 %v1201
        %1467 = vmatprep.subr.mxu0 0.0
        %1468 = vmatpush1.msra.mxu0 %v1202
        %1469 = vmatprep.subr.mxu0 0.0
        %1470 = vmatpush1.msra.mxu0 %v1203
        %1471 = vmatprep.subr.mxu0 0.0
        %1472 = vmatpush1.msra.mxu0 %v1204
        %1473 = vmatprep.subr.mxu0 0.0
        %1474 = vmatpush1.msra.mxu0 %v1205
        %1475 = vmatprep.subr.mxu0 0.0
        %1476 = vmatpush1.msra.mxu0 %v1206
        %1477 = vmatprep.subr.mxu0 0.0
        %1478 = vmatpush1.msra.mxu0 %v1207
        %1479 = vmatprep.subr.mxu0 0.0
        %1480 = vmatpush1.msra.mxu0 %v1208
        %1481 = vmatprep.subr.mxu0 0.0
        %1482 = vmatpush1.msra.mxu0 %v1209
        %1483 = vmatprep.subr.mxu0 0.0
        %1484 = vmatpush1.msra.mxu0 %v1210
        %1485 = vmatprep.mubr.f32.mxu0 %v1081
        %1486 = vmatmul.mubr.f32.gmra.mrb[0].mxu0 %v1080
        %v1487 = vpop.f32.mrb[0].mxu0
        %v1488 = vadd.f32 %v1418, %v1487
        %v1489 = vpop.f32.mrb[0].mxu0
        %1490 = vdwg.mxu0
        %v1491 = vadd.f32 %v1052, %v1488
        %1492 = vset.pattern.permute.xlu0 3
        %1493 = vperm.xlu0 %1492, %v183
        %v1494 = vpop.permute.xlu0 %1493
        %vm1495 = vcmp.eq.s32.totalorder %v1494, %v175
        %vm1496 = vcmp.eq.s32.totalorder %v1494, %v176
        %vm1497 = vcmp.eq.s32.totalorder %v1494, %v177
        %vm1498 = vcmp.eq.s32.totalorder %v1494, %v178
        %vm1499 = vcmp.eq.s32.totalorder %v1494, %v179
        %vm1500 = vcmp.eq.s32.totalorder %v1494, %v180
        %vm1501 = vcmp.eq.s32.totalorder %v1494, %v181
        %vm1502 = vcmp.eq.s32.totalorder %v1494, %v182
        %v1503 = vsel %vm1495, 1, 0
        %v1504 = vsel %vm1496, 1, 0
        %v1505 = vsel %vm1497, 1, 0
        %v1506 = vsel %vm1498, 1, 0
        %v1507 = vsel %vm1499, 1, 0
        %v1508 = vsel %vm1500, 1, 0
        %v1509 = vsel %vm1501, 1, 0
        %v1510 = vsel %vm1502, 1, 0
        %v1511 = vcvt.s32.f32 %v1503
        %v1512 = vcvt.s32.f32 %v1504
        %v1513 = vcvt.s32.f32 %v1505
        %v1514 = vcvt.s32.f32 %v1506
        %v1515 = vcvt.s32.f32 %v1507
        %v1516 = vcvt.s32.f32 %v1508
        %v1517 = vcvt.s32.f32 %v1509
        %v1518 = vcvt.s32.f32 %v1510
        %s1519 = scalar_lea.vmem [#allocation5], 3072
        %v1520 = vld [vmem:[%s1519] sm:$0xff]
        %v1521 = vld [vmem:[%s1519 + $0x8] sm:$0xff]
        %v1522 = vld [vmem:[%s1519 + $0x10] sm:$0xff]
        %v1523 = vld [vmem:[%s1519 + $0x18] sm:$0xff]
        %v1524 = vld [vmem:[%s1519 + $0x20] sm:$0xff]
        %v1525 = vld [vmem:[%s1519 + $0x28] sm:$0xff]
        %v1526 = vld [vmem:[%s1519 + $0x30] sm:$0xff]
        %v1527 = vld [vmem:[%s1519 + $0x38] sm:$0xff]
        %v1528 = vld [vmem:[%s1519 + $0x40] sm:$0xff]
        %v1529 = vld [vmem:[%s1519 + $0x48] sm:$0xff]
        %v1530 = vld [vmem:[%s1519 + $0x50] sm:$0xff]
        %v1531 = vld [vmem:[%s1519 + $0x58] sm:$0xff]
        %v1532 = vld [vmem:[%s1519 + $0x60] sm:$0xff]
        %v1533 = vld [vmem:[%s1519 + $0x68] sm:$0xff]
        %v1534 = vld [vmem:[%s1519 + $0x70] sm:$0xff]
        %v1535 = vld [vmem:[%s1519 + $0x78] sm:$0xff]
        %v1536 = vld [vmem:[%s1519 + $0x80] sm:$0xff]
        %v1537 = vld [vmem:[%s1519 + $0x88] sm:$0xff]
        %v1538 = vld [vmem:[%s1519 + $0x90] sm:$0xff]
        %v1539 = vld [vmem:[%s1519 + $0x98] sm:$0xff]
        %v1540 = vld [vmem:[%s1519 + $0xa0] sm:$0xff]
        %v1541 = vld [vmem:[%s1519 + $0xa8] sm:$0xff]
        %v1542 = vld [vmem:[%s1519 + $0xb0] sm:$0xff]
        %v1543 = vld [vmem:[%s1519 + $0xb8] sm:$0xff]
        %v1544 = vld [vmem:[%s1519 + $0xc0] sm:$0xff]
        %v1545 = vld [vmem:[%s1519 + $0xc8] sm:$0xff]
        %v1546 = vld [vmem:[%s1519 + $0xd0] sm:$0xff]
        %v1547 = vld [vmem:[%s1519 + $0xd8] sm:$0xff]
        %v1548 = vld [vmem:[%s1519 + $0xe0] sm:$0xff]
        %v1549 = vld [vmem:[%s1519 + $0xe8] sm:$0xff]
        %v1550 = vld [vmem:[%s1519 + $0xf0] sm:$0xff]
        %v1551 = vld [vmem:[%s1519 + $0xf8] sm:$0xff]
        %v1552 = vld [vmem:[%s1519 + $0x100] sm:$0xff]
        %v1553 = vld [vmem:[%s1519 + $0x108] sm:$0xff]
        %v1554 = vld [vmem:[%s1519 + $0x110] sm:$0xff]
        %v1555 = vld [vmem:[%s1519 + $0x118] sm:$0xff]
        %v1556 = vld [vmem:[%s1519 + $0x120] sm:$0xff]
        %v1557 = vld [vmem:[%s1519 + $0x128] sm:$0xff]
        %v1558 = vld [vmem:[%s1519 + $0x130] sm:$0xff]
        %v1559 = vld [vmem:[%s1519 + $0x138] sm:$0xff]
        %v1560 = vld [vmem:[%s1519 + $0x140] sm:$0xff]
        %v1561 = vld [vmem:[%s1519 + $0x148] sm:$0xff]
        %v1562 = vld [vmem:[%s1519 + $0x150] sm:$0xff]
        %v1563 = vld [vmem:[%s1519 + $0x158] sm:$0xff]
        %v1564 = vld [vmem:[%s1519 + $0x160] sm:$0xff]
        %v1565 = vld [vmem:[%s1519 + $0x168] sm:$0xff]
        %v1566 = vld [vmem:[%s1519 + $0x170] sm:$0xff]
        %v1567 = vld [vmem:[%s1519 + $0x178] sm:$0xff]
        %v1568 = vld [vmem:[%s1519 + $0x180] sm:$0xff]
        %v1569 = vld [vmem:[%s1519 + $0x188] sm:$0xff]
        %v1570 = vld [vmem:[%s1519 + $0x190] sm:$0xff]
        %v1571 = vld [vmem:[%s1519 + $0x198] sm:$0xff]
        %v1572 = vld [vmem:[%s1519 + $0x1a0] sm:$0xff]
        %v1573 = vld [vmem:[%s1519 + $0x1a8] sm:$0xff]
        %v1574 = vld [vmem:[%s1519 + $0x1b0] sm:$0xff]
        %v1575 = vld [vmem:[%s1519 + $0x1b8] sm:$0xff]
        %v1576 = vld [vmem:[%s1519 + $0x1c0] sm:$0xff]
        %v1577 = vld [vmem:[%s1519 + $0x1c8] sm:$0xff]
        %v1578 = vld [vmem:[%s1519 + $0x1d0] sm:$0xff]
        %v1579 = vld [vmem:[%s1519 + $0x1d8] sm:$0xff]
        %v1580 = vld [vmem:[%s1519 + $0x1e0] sm:$0xff]
        %v1581 = vld [vmem:[%s1519 + $0x1e8] sm:$0xff]
        %v1582 = vld [vmem:[%s1519 + $0x1f0] sm:$0xff]
        %v1583 = vld [vmem:[%s1519 + $0x1f8] sm:$0xff]
        %v1584 = vld [vmem:[%s1519 + $0x200] sm:$0xff]
        %v1585 = vld [vmem:[%s1519 + $0x208] sm:$0xff]
        %v1586 = vld [vmem:[%s1519 + $0x210] sm:$0xff]
        %v1587 = vld [vmem:[%s1519 + $0x218] sm:$0xff]
        %v1588 = vld [vmem:[%s1519 + $0x220] sm:$0xff]
        %v1589 = vld [vmem:[%s1519 + $0x228] sm:$0xff]
        %v1590 = vld [vmem:[%s1519 + $0x230] sm:$0xff]
        %v1591 = vld [vmem:[%s1519 + $0x238] sm:$0xff]
        %v1592 = vld [vmem:[%s1519 + $0x240] sm:$0xff]
        %v1593 = vld [vmem:[%s1519 + $0x248] sm:$0xff]
        %v1594 = vld [vmem:[%s1519 + $0x250] sm:$0xff]
        %v1595 = vld [vmem:[%s1519 + $0x258] sm:$0xff]
        %v1596 = vld [vmem:[%s1519 + $0x260] sm:$0xff]
        %v1597 = vld [vmem:[%s1519 + $0x268] sm:$0xff]
        %v1598 = vld [vmem:[%s1519 + $0x270] sm:$0xff]
        %v1599 = vld [vmem:[%s1519 + $0x278] sm:$0xff]
        %v1600 = vld [vmem:[%s1519 + $0x280] sm:$0xff]
        %v1601 = vld [vmem:[%s1519 + $0x288] sm:$0xff]
        %v1602 = vld [vmem:[%s1519 + $0x290] sm:$0xff]
        %v1603 = vld [vmem:[%s1519 + $0x298] sm:$0xff]
        %v1604 = vld [vmem:[%s1519 + $0x2a0] sm:$0xff]
        %v1605 = vld [vmem:[%s1519 + $0x2a8] sm:$0xff]
        %v1606 = vld [vmem:[%s1519 + $0x2b0] sm:$0xff]
        %v1607 = vld [vmem:[%s1519 + $0x2b8] sm:$0xff]
        %v1608 = vld [vmem:[%s1519 + $0x2c0] sm:$0xff]
        %v1609 = vld [vmem:[%s1519 + $0x2c8] sm:$0xff]
        %v1610 = vld [vmem:[%s1519 + $0x2d0] sm:$0xff]
        %v1611 = vld [vmem:[%s1519 + $0x2d8] sm:$0xff]
        %v1612 = vld [vmem:[%s1519 + $0x2e0] sm:$0xff]
        %v1613 = vld [vmem:[%s1519 + $0x2e8] sm:$0xff]
        %v1614 = vld [vmem:[%s1519 + $0x2f0] sm:$0xff]
        %v1615 = vld [vmem:[%s1519 + $0x2f8] sm:$0xff]
        %v1616 = vld [vmem:[%s1519 + $0x300] sm:$0xff]
        %v1617 = vld [vmem:[%s1519 + $0x308] sm:$0xff]
        %v1618 = vld [vmem:[%s1519 + $0x310] sm:$0xff]
        %v1619 = vld [vmem:[%s1519 + $0x318] sm:$0xff]
        %v1620 = vld [vmem:[%s1519 + $0x320] sm:$0xff]
        %v1621 = vld [vmem:[%s1519 + $0x328] sm:$0xff]
        %v1622 = vld [vmem:[%s1519 + $0x330] sm:$0xff]
        %v1623 = vld [vmem:[%s1519 + $0x338] sm:$0xff]
        %v1624 = vld [vmem:[%s1519 + $0x340] sm:$0xff]
        %v1625 = vld [vmem:[%s1519 + $0x348] sm:$0xff]
        %v1626 = vld [vmem:[%s1519 + $0x350] sm:$0xff]
        %v1627 = vld [vmem:[%s1519 + $0x358] sm:$0xff]
        %v1628 = vld [vmem:[%s1519 + $0x360] sm:$0xff]
        %v1629 = vld [vmem:[%s1519 + $0x368] sm:$0xff]
        %v1630 = vld [vmem:[%s1519 + $0x370] sm:$0xff]
        %v1631 = vld [vmem:[%s1519 + $0x378] sm:$0xff]
        %v1632 = vld [vmem:[%s1519 + $0x380] sm:$0xff]
        %v1633 = vld [vmem:[%s1519 + $0x388] sm:$0xff]
        %v1634 = vld [vmem:[%s1519 + $0x390] sm:$0xff]
        %v1635 = vld [vmem:[%s1519 + $0x398] sm:$0xff]
        %v1636 = vld [vmem:[%s1519 + $0x3a0] sm:$0xff]
        %v1637 = vld [vmem:[%s1519 + $0x3a8] sm:$0xff]
        %v1638 = vld [vmem:[%s1519 + $0x3b0] sm:$0xff]
        %v1639 = vld [vmem:[%s1519 + $0x3b8] sm:$0xff]
        %v1640 = vld [vmem:[%s1519 + $0x3c0] sm:$0xff]
        %v1641 = vld [vmem:[%s1519 + $0x3c8] sm:$0xff]
        %v1642 = vld [vmem:[%s1519 + $0x3d0] sm:$0xff]
        %v1643 = vld [vmem:[%s1519 + $0x3d8] sm:$0xff]
        %v1644 = vld [vmem:[%s1519 + $0x3e0] sm:$0xff]
        %v1645 = vld [vmem:[%s1519 + $0x3e8] sm:$0xff]
        %v1646 = vld [vmem:[%s1519 + $0x3f0] sm:$0xff]
        %v1647 = vld [vmem:[%s1519 + $0x3f8] sm:$0xff]
        %1648 = vmatprep.subr.mxu0 0.0
        %1649 = vmatpush1.msra.mxu0 %v1520
        %1650 = vmatprep.subr.mxu0 0.0
        %1651 = vmatpush1.msra.mxu0 %v1521
        %1652 = vmatprep.subr.mxu0 0.0
        %1653 = vmatpush1.msra.mxu0 %v1522
        %1654 = vmatprep.subr.mxu0 0.0
        %1655 = vmatpush1.msra.mxu0 %v1523
        %1656 = vmatprep.subr.mxu0 0.0
        %1657 = vmatpush1.msra.mxu0 %v1524
        %1658 = vmatprep.subr.mxu0 0.0
        %1659 = vmatpush1.msra.mxu0 %v1525
        %1660 = vmatprep.subr.mxu0 0.0
        %1661 = vmatpush1.msra.mxu0 %v1526
        %1662 = vmatprep.subr.mxu0 0.0
        %1663 = vmatpush1.msra.mxu0 %v1527
        %1664 = vmatprep.subr.mxu0 0.0
        %1665 = vmatpush1.msra.mxu0 %v1528
        %1666 = vmatprep.subr.mxu0 0.0
        %1667 = vmatpush1.msra.mxu0 %v1529
        %1668 = vmatprep.subr.mxu0 0.0
        %1669 = vmatpush1.msra.mxu0 %v1530
        %1670 = vmatprep.subr.mxu0 0.0
        %1671 = vmatpush1.msra.mxu0 %v1531
        %1672 = vmatprep.subr.mxu0 0.0
        %1673 = vmatpush1.msra.mxu0 %v1532
        %1674 = vmatprep.subr.mxu0 0.0
        %1675 = vmatpush1.msra.mxu0 %v1533
        %1676 = vmatprep.subr.mxu0 0.0
        %1677 = vmatpush1.msra.mxu0 %v1534
        %1678 = vmatprep.subr.mxu0 0.0
        %1679 = vmatpush1.msra.mxu0 %v1535
        %1680 = vmatprep.subr.mxu0 0.0
        %1681 = vmatpush1.msra.mxu0 %v1536
        %1682 = vmatprep.subr.mxu0 0.0
        %1683 = vmatpush1.msra.mxu0 %v1537
        %1684 = vmatprep.subr.mxu0 0.0
        %1685 = vmatpush1.msra.mxu0 %v1538
        %1686 = vmatprep.subr.mxu0 0.0
        %1687 = vmatpush1.msra.mxu0 %v1539
        %1688 = vmatprep.subr.mxu0 0.0
        %1689 = vmatpush1.msra.mxu0 %v1540
        %1690 = vmatprep.subr.mxu0 0.0
        %1691 = vmatpush1.msra.mxu0 %v1541
        %1692 = vmatprep.subr.mxu0 0.0
        %1693 = vmatpush1.msra.mxu0 %v1542
        %1694 = vmatprep.subr.mxu0 0.0
        %1695 = vmatpush1.msra.mxu0 %v1543
        %1696 = vmatprep.subr.mxu0 0.0
        %1697 = vmatpush1.msra.mxu0 %v1544
        %1698 = vmatprep.subr.mxu0 0.0
        %1699 = vmatpush1.msra.mxu0 %v1545
        %1700 = vmatprep.subr.mxu0 0.0
        %1701 = vmatpush1.msra.mxu0 %v1546
        %1702 = vmatprep.subr.mxu0 0.0
        %1703 = vmatpush1.msra.mxu0 %v1547
        %1704 = vmatprep.subr.mxu0 0.0
        %1705 = vmatpush1.msra.mxu0 %v1548
        %1706 = vmatprep.subr.mxu0 0.0
        %1707 = vmatpush1.msra.mxu0 %v1549
        %1708 = vmatprep.subr.mxu0 0.0
        %1709 = vmatpush1.msra.mxu0 %v1550
        %1710 = vmatprep.subr.mxu0 0.0
        %1711 = vmatpush1.msra.mxu0 %v1551
        %1712 = vmatprep.mubr.f32.mxu0 %v1512
        %1713 = vmatmul.mubr.f32.gmra.mrb[0].mxu0 %v1511
        %v1714 = vpop.f32.mrb[0].mxu0
        %v1715 = vadd.f32 0.0, %v1714
        %v1716 = vpop.f32.mrb[0].mxu0
        %1717 = vdwg.mxu0
        %1718 = vmatprep.subr.mxu0 0.0
        %1719 = vmatpush1.msra.mxu0 %v1552
        %1720 = vmatprep.subr.mxu0 0.0
        %1721 = vmatpush1.msra.mxu0 %v1553
        %1722 = vmatprep.subr.mxu0 0.0
        %1723 = vmatpush1.msra.mxu0 %v1554
        %1724 = vmatprep.subr.mxu0 0.0
        %1725 = vmatpush1.msra.mxu0 %v1555
        %1726 = vmatprep.subr.mxu0 0.0
        %1727 = vmatpush1.msra.mxu0 %v1556
        %1728 = vmatprep.subr.mxu0 0.0
        %1729 = vmatpush1.msra.mxu0 %v1557
        %1730 = vmatprep.subr.mxu0 0.0
        %1731 = vmatpush1.msra.mxu0 %v1558
        %1732 = vmatprep.subr.mxu0 0.0
        %1733 = vmatpush1.msra.mxu0 %v1559
        %1734 = vmatprep.subr.mxu0 0.0
        %1735 = vmatpush1.msra.mxu0 %v1560
        %1736 = vmatprep.subr.mxu0 0.0
        %1737 = vmatpush1.msra.mxu0 %v1561
        %1738 = vmatprep.subr.mxu0 0.0
        %1739 = vmatpush1.msra.mxu0 %v1562
        %1740 = vmatprep.subr.mxu0 0.0
        %1741 = vmatpush1.msra.mxu0 %v1563
        %1742 = vmatprep.subr.mxu0 0.0
        %1743 = vmatpush1.msra.mxu0 %v1564
        %1744 = vmatprep.subr.mxu0 0.0
        %1745 = vmatpush1.msra.mxu0 %v1565
        %1746 = vmatprep.subr.mxu0 0.0
        %1747 = vmatpush1.msra.mxu0 %v1566
        %1748 = vmatprep.subr.mxu0 0.0
        %1749 = vmatpush1.msra.mxu0 %v1567
        %1750 = vmatprep.subr.mxu0 0.0
        %1751 = vmatpush1.msra.mxu0 %v1568
        %1752 = vmatprep.subr.mxu0 0.0
        %1753 = vmatpush1.msra.mxu0 %v1569
        %1754 = vmatprep.subr.mxu0 0.0
        %1755 = vmatpush1.msra.mxu0 %v1570
        %1756 = vmatprep.subr.mxu0 0.0
        %1757 = vmatpush1.msra.mxu0 %v1571
        %1758 = vmatprep.subr.mxu0 0.0
        %1759 = vmatpush1.msra.mxu0 %v1572
        %1760 = vmatprep.subr.mxu0 0.0
        %1761 = vmatpush1.msra.mxu0 %v1573
        %1762 = vmatprep.subr.mxu0 0.0
        %1763 = vmatpush1.msra.mxu0 %v1574
        %1764 = vmatprep.subr.mxu0 0.0
        %1765 = vmatpush1.msra.mxu0 %v1575
        %1766 = vmatprep.subr.mxu0 0.0
        %1767 = vmatpush1.msra.mxu0 %v1576
        %1768 = vmatprep.subr.mxu0 0.0
        %1769 = vmatpush1.msra.mxu0 %v1577
        %1770 = vmatprep.subr.mxu0 0.0
        %1771 = vmatpush1.msra.mxu0 %v1578
        %1772 = vmatprep.subr.mxu0 0.0
        %1773 = vmatpush1.msra.mxu0 %v1579
        %1774 = vmatprep.subr.mxu0 0.0
        %1775 = vmatpush1.msra.mxu0 %v1580
        %1776 = vmatprep.subr.mxu0 0.0
        %1777 = vmatpush1.msra.mxu0 %v1581
        %1778 = vmatprep.subr.mxu0 0.0
        %1779 = vmatpush1.msra.mxu0 %v1582
        %1780 = vmatprep.subr.mxu0 0.0
        %1781 = vmatpush1.msra.mxu0 %v1583
        %1782 = vmatprep.mubr.f32.mxu0 %v1514
        %1783 = vmatmul.mubr.f32.gmra.mrb[0].mxu0 %v1513
        %v1784 = vpop.f32.mrb[0].mxu0
        %v1785 = vadd.f32 %v1715, %v1784
        %v1786 = vpop.f32.mrb[0].mxu0
        %1787 = vdwg.mxu0
        %1788 = vmatprep.subr.mxu0 0.0
        %1789 = vmatpush1.msra.mxu0 %v1584
        %1790 = vmatprep.subr.mxu0 0.0
        %1791 = vmatpush1.msra.mxu0 %v1585
        %1792 = vmatprep.subr.mxu0 0.0
        %1793 = vmatpush1.msra.mxu0 %v1586
        %1794 = vmatprep.subr.mxu0 0.0
        %1795 = vmatpush1.msra.mxu0 %v1587
        %1796 = vmatprep.subr.mxu0 0.0
        %1797 = vmatpush1.msra.mxu0 %v1588
        %1798 = vmatprep.subr.mxu0 0.0
        %1799 = vmatpush1.msra.mxu0 %v1589
        %1800 = vmatprep.subr.mxu0 0.0
        %1801 = vmatpush1.msra.mxu0 %v1590
        %1802 = vmatprep.subr.mxu0 0.0
        %1803 = vmatpush1.msra.mxu0 %v1591
        %1804 = vmatprep.subr.mxu0 0.0
        %1805 = vmatpush1.msra.mxu0 %v1592
        %1806 = vmatprep.subr.mxu0 0.0
        %1807 = vmatpush1.msra.mxu0 %v1593
        %1808 = vmatprep.subr.mxu0 0.0
        %1809 = vmatpush1.msra.mxu0 %v1594
        %1810 = vmatprep.subr.mxu0 0.0
        %1811 = vmatpush1.msra.mxu0 %v1595
        %1812 = vmatprep.subr.mxu0 0.0
        %1813 = vmatpush1.msra.mxu0 %v1596
        %1814 = vmatprep.subr.mxu0 0.0
        %1815 = vmatpush1.msra.mxu0 %v1597
        %1816 = vmatprep.subr.mxu0 0.0
        %1817 = vmatpush1.msra.mxu0 %v1598
        %1818 = vmatprep.subr.mxu0 0.0
        %1819 = vmatpush1.msra.mxu0 %v1599
        %1820 = vmatprep.subr.mxu0 0.0
        %1821 = vmatpush1.msra.mxu0 %v1600
        %1822 = vmatprep.subr.mxu0 0.0
        %1823 = vmatpush1.msra.mxu0 %v1601
        %1824 = vmatprep.subr.mxu0 0.0
        %1825 = vmatpush1.msra.mxu0 %v1602
        %1826 = vmatprep.subr.mxu0 0.0
        %1827 = vmatpush1.msra.mxu0 %v1603
        %1828 = vmatprep.subr.mxu0 0.0
        %1829 = vmatpush1.msra.mxu0 %v1604
        %1830 = vmatprep.subr.mxu0 0.0
        %1831 = vmatpush1.msra.mxu0 %v1605
        %1832 = vmatprep.subr.mxu0 0.0
        %1833 = vmatpush1.msra.mxu0 %v1606
        %1834 = vmatprep.subr.mxu0 0.0
        %1835 = vmatpush1.msra.mxu0 %v1607
        %1836 = vmatprep.subr.mxu0 0.0
        %1837 = vmatpush1.msra.mxu0 %v1608
        %1838 = vmatprep.subr.mxu0 0.0
        %1839 = vmatpush1.msra.mxu0 %v1609
        %1840 = vmatprep.subr.mxu0 0.0
        %1841 = vmatpush1.msra.mxu0 %v1610
        %1842 = vmatprep.subr.mxu0 0.0
        %1843 = vmatpush1.msra.mxu0 %v1611
        %1844 = vmatprep.subr.mxu0 0.0
        %1845 = vmatpush1.msra.mxu0 %v1612
        %1846 = vmatprep.subr.mxu0 0.0
        %1847 = vmatpush1.msra.mxu0 %v1613
        %1848 = vmatprep.subr.mxu0 0.0
        %1849 = vmatpush1.msra.mxu0 %v1614
        %1850 = vmatprep.subr.mxu0 0.0
        %1851 = vmatpush1.msra.mxu0 %v1615
        %1852 = vmatprep.mubr.f32.mxu0 %v1516
        %1853 = vmatmul.mubr.f32.gmra.mrb[0].mxu0 %v1515
        %v1854 = vpop.f32.mrb[0].mxu0
        %v1855 = vadd.f32 %v1785, %v1854
        %v1856 = vpop.f32.mrb[0].mxu0
        %1857 = vdwg.mxu0
        %1858 = vmatprep.subr.mxu0 0.0
        %1859 = vmatpush1.msra.mxu0 %v1616
        %1860 = vmatprep.subr.mxu0 0.0
        %1861 = vmatpush1.msra.mxu0 %v1617
        %1862 = vmatprep.subr.mxu0 0.0
        %1863 = vmatpush1.msra.mxu0 %v1618
        %1864 = vmatprep.subr.mxu0 0.0
        %1865 = vmatpush1.msra.mxu0 %v1619
        %1866 = vmatprep.subr.mxu0 0.0
        %1867 = vmatpush1.msra.mxu0 %v1620
        %1868 = vmatprep.subr.mxu0 0.0
        %1869 = vmatpush1.msra.mxu0 %v1621
        %1870 = vmatprep.subr.mxu0 0.0
        %1871 = vmatpush1.msra.mxu0 %v1622
        %1872 = vmatprep.subr.mxu0 0.0
        %1873 = vmatpush1.msra.mxu0 %v1623
        %1874 = vmatprep.subr.mxu0 0.0
        %1875 = vmatpush1.msra.mxu0 %v1624
        %1876 = vmatprep.subr.mxu0 0.0
        %1877 = vmatpush1.msra.mxu0 %v1625
        %1878 = vmatprep.subr.mxu0 0.0
        %1879 = vmatpush1.msra.mxu0 %v1626
        %1880 = vmatprep.subr.mxu0 0.0
        %1881 = vmatpush1.msra.mxu0 %v1627
        %1882 = vmatprep.subr.mxu0 0.0
        %1883 = vmatpush1.msra.mxu0 %v1628
        %1884 = vmatprep.subr.mxu0 0.0
        %1885 = vmatpush1.msra.mxu0 %v1629
        %1886 = vmatprep.subr.mxu0 0.0
        %1887 = vmatpush1.msra.mxu0 %v1630
        %1888 = vmatprep.subr.mxu0 0.0
        %1889 = vmatpush1.msra.mxu0 %v1631
        %1890 = vmatprep.subr.mxu0 0.0
        %1891 = vmatpush1.msra.mxu0 %v1632
        %1892 = vmatprep.subr.mxu0 0.0
        %1893 = vmatpush1.msra.mxu0 %v1633
        %1894 = vmatprep.subr.mxu0 0.0
        %1895 = vmatpush1.msra.mxu0 %v1634
        %1896 = vmatprep.subr.mxu0 0.0
        %1897 = vmatpush1.msra.mxu0 %v1635
        %1898 = vmatprep.subr.mxu0 0.0
        %1899 = vmatpush1.msra.mxu0 %v1636
        %1900 = vmatprep.subr.mxu0 0.0
        %1901 = vmatpush1.msra.mxu0 %v1637
        %1902 = vmatprep.subr.mxu0 0.0
        %1903 = vmatpush1.msra.mxu0 %v1638
        %1904 = vmatprep.subr.mxu0 0.0
        %1905 = vmatpush1.msra.mxu0 %v1639
        %1906 = vmatprep.subr.mxu0 0.0
        %1907 = vmatpush1.msra.mxu0 %v1640
        %1908 = vmatprep.subr.mxu0 0.0
        %1909 = vmatpush1.msra.mxu0 %v1641
        %1910 = vmatprep.subr.mxu0 0.0
        %1911 = vmatpush1.msra.mxu0 %v1642
        %1912 = vmatprep.subr.mxu0 0.0
        %1913 = vmatpush1.msra.mxu0 %v1643
        %1914 = vmatprep.subr.mxu0 0.0
        %1915 = vmatpush1.msra.mxu0 %v1644
        %1916 = vmatprep.subr.mxu0 0.0
        %1917 = vmatpush1.msra.mxu0 %v1645
        %1918 = vmatprep.subr.mxu0 0.0
        %1919 = vmatpush1.msra.mxu0 %v1646
        %1920 = vmatprep.subr.mxu0 0.0
        %1921 = vmatpush1.msra.mxu0 %v1647
        %1922 = vmatprep.mubr.f32.mxu0 %v1518
        %1923 = vmatmul.mubr.f32.gmra.mrb[0].mxu0 %v1517
        %v1924 = vpop.f32.mrb[0].mxu0
        %v1925 = vadd.f32 %v1855, %v1924
        %v1926 = vpop.f32.mrb[0].mxu0
        %1927 = vdwg.mxu0
        %v1928 = vadd.f32 %v1491, %v1925
        %1929 = vst [vmem:[%s173] sm:$0xff] %v1928
        %s1930 = sand.u32 %s75, 1
        %s1931 = scalar_lea.sflag [#allocation4], %s1930
        %s1932 = sand.u32 %s75, 1
        %s1933 = smul.addr %s1932, 8
        %s1934 = scalar_lea.vmem [#allocation7], %s1933
        // Predicated region
        $region37: #{tpu_custom_call.1} parent=27 // pred_check
          %p1935 = pneg %p85
        $region38: #{tpu_custom_call.1} parent=27 // pred_check_branch
          %1937 = sbr.rel (%p1935) target = $region40
        $region39: #{tpu_custom_call.1} parent=27 // pred_region
          %s1939 = ssub.s32 128, 128
          %1940 = vsyncadd %s1931, %s1939
          %s1941 = smul.addr %s20, 128
          %s1942 = scalar_lea.hbm %s2, %s1941
          %s1944 = sshll.u32 %s1934, 4
          %s1945 = int_to_ptr.vmem [resolvable:$true] %s1944
          %1947 = dma.vmem_to_hbm [thread:$0]  %s1945, 128, %s1942, %s1931
        $region40: #{tpu_custom_call.1} parent=27 // pred_fallthru
          _
      $region28: #{tpu_custom_call.1} parent=5 // pred_fallthru
        _
      %p1948 = scmp.le.s32.totalorder 2, %s15
      // Predicated region
      $region41: #{tpu_custom_call.1} parent=5 // pred_check
        %p1949 = pneg %p1948
      $region42: #{tpu_custom_call.1} parent=5 // pred_check_branch
        %1951 = sbr.rel (%p1949) target = $region44
      $region43: #{tpu_custom_call.1} parent=5 // pred_region
        %s1952 = ssub.s32 %s15, 2
        // Predicated region
        $region45: #{tpu_custom_call.1} parent=43 // pred_check
          %p1953 = pneg %p91
        $region46: #{tpu_custom_call.1} parent=43 // pred_check_branch
          %1955 = sbr.rel (%p1953) target = $region48
        $region47: #{tpu_custom_call.1} parent=43 // pred_region
          %s1956 = sand.u32 %s76, 1
          %s1957 = scalar_lea.sflag [#allocation4], %s1956
          %s1958 = sand.u32 %s76, 1
          %s1959 = smul.addr %s1958, 8
          %s1960 = scalar_lea.vmem [#allocation7], %s1959
          %1961 = dma.done %s1957, 128
        $region48: #{tpu_custom_call.1} parent=43 // pred_fallthru
          _
      $region44: #{tpu_custom_call.1} parent=5 // pred_fallthru
        _
    $region6: #{tpu_custom_call.1} parent=1 // loop_footer
      %s19 = sadd.s32 1, %s15
    $region7: #{tpu_custom_call.1} parent=1 // loop_footer_branch
      %14 = sbr.rel target = $region3
    $region8: #{tpu_custom_call.1} parent=1 // loop_exit
      _
    %1962 = vsyncpa [#allocation3], 1
    %s1963 = scalar_lea.sflag [#allocation3], 1
    %1964 = vsyncpa %s1963, 1
    %1965 = vsyncpa [#allocation6], 1
    %1966 = vsyncpa [#allocation4], 1
    %s1967 = scalar_lea.sflag [#allocation4], 1
    %1968 = vsyncpa %s1967, 1

</llo_original>
